<compile_context>
chip_gen: v5e
topology: v5e:2x2
jax: 0.10.0
libtpu: 0.0.40
codegen_flags: <defaults>
</compile_context>

<pallas_src>
import jax
import jax.numpy as jnp
import numpy as np
from jax import lax
from jax.experimental import pallas as pl
from jax.experimental.pallas import tpu as pltpu


# ---------------------------------------------------------------------------
# Kernel
# ---------------------------------------------------------------------------
def _make_kernel(H, W):
    L = H + W
    HIGH = lax.Precision.HIGHEST

    def _bmm(lhs_boi, rhs_bil):
        # (Bt, O, I) x (Bt, I, L) -> (Bt, O, L), single batched MXU call.
        return lax.dot_general(lhs_boi, rhs_bil,
                               (((2,), (1,)), ((0,), (0,))),
                               precision=HIGH,
                               preferred_element_type=jnp.float32)

    def kernel(x_ref, pext_ref, ehw_ref, w3_ref, wphw_ref, wgap_ref, sh_ref,
               out_ref):
        Bt, C, HW = x_ref.shape

        x3 = x_ref[...].astype(jnp.float32)              # (Bt, C, HW)

        pext = pext_ref[...]                             # (HW, 3L+1)
        ehw = ehw_ref[...]                               # (L, HW) = [EhT; EwT]
        w3 = w3_ref[...]                                 # (C, 3C) BN-scaled
        wphw = wphw_ref[...]                             # (C, C)  BN-scaled
        wgap = wgap_ref[...]                             # (C, C)  BN-scaled
        sh = sh_ref[...]                                 # (C, 3)  BN shifts
        hw_sh = sh[:, 0:1][None]                         # (1, C, 1)
        phw_sh = sh[:, 1:2][None]
        gap_sh = sh[:, 2:3][None]

        # Tiny channel-mix weights broadcast once so each conv below is one
        # batched matmul (no per-b Python loop, no spills).
        w3_b = jnp.broadcast_to(w3[None], (Bt, C, 3 * C))
        wphw_b = jnp.broadcast_to(wphw[None], (Bt, C, C))
        wgap_b = jnp.broadcast_to(wgap[None], (Bt, C, C))

        # ---- all pools (3 conv taps of the H|W profile + GAP): one MXU pass
        #      with M = Bt*C rows --------------------------------------------
        pools = lax.dot_general(
            x3.reshape(Bt * C, HW), pext, (((1,), (0,)), ((), ())),
            precision=HIGH, preferred_element_type=jnp.float32)
        pools = pools.reshape(Bt, C, 3 * L + 1)
        hw_l = pools[:, :, 0:L]                          # profile shifted -1
        hw_c = pools[:, :, L:2 * L]                      # profile
        hw_r = pools[:, :, 2 * L:3 * L]                  # profile shifted +1
        pool_ch = pools[:, :, 3 * L:3 * L + 1]           # (Bt, C, 1) GAP
        hw_stack = jnp.concatenate([hw_l, hw_c, hw_r], axis=1)   # (Bt, 3C, L)

        # ---- conv_hw (3,1) + folded BN + SiLU -------------------------------
        y = _bmm(w3_b, hw_stack) + hw_sh                 # (Bt, C, L)
        hw_feat = y * jax.nn.sigmoid(y)

        # ---- conv_pool_hw (1x1) + BN + SiLU, sigmoid -> attention weight ----
        z = _bmm(wphw_b, hw_feat) + phw_sh
        z = z * jax.nn.sigmoid(z)
        weight = jax.nn.sigmoid(z)                       # (Bt, C, L)

        # ---- gap branch: 1x1 conv + BN + SiLU on the global pool ------------
        g = _bmm(wgap_b, pool_ch) + gap_sh               # (Bt, C, 1)
        g = g * jax.nn.sigmoid(g)
        ch_feat = g * jnp.mean(weight, axis=2, keepdims=True)     # (Bt, C, 1)

        # ---- gates; fold the channel gate into the H gate -------------------
        h_feat = hw_feat[:, :, :H] * weight[:, :, :H]    # (Bt, C, H)
        w_feat = hw_feat[:, :, H:] * weight[:, :, H:]    # (Bt, C, W)
        sig_hc = jax.nn.sigmoid(h_feat) * jax.nn.sigmoid(ch_feat)
        sig_w = jax.nn.sigmoid(w_feat)

        # ---- expand gates to the dense HW axis: M = Bt*C matmuls ------------
        gate_h = lax.dot_general(
            sig_hc.reshape(Bt * C, H), ehw[0:H, :], (((1,), (0,)), ((), ())),
            precision=HIGH, preferred_element_type=jnp.float32)
        gate_w = lax.dot_general(
            sig_w.reshape(Bt * C, W), ehw[H:L, :], (((1,), (0,)), ((), ())),
            precision=HIGH, preferred_element_type=jnp.float32)
        gate = (gate_h * gate_w).reshape(Bt, C, HW)

        # ---- dense combine + residual, lane-dense store ----------------------
        out_ref[...] = (x3 * (gate + 1.0)).astype(out_ref.dtype)

    return kernel


# ---------------------------------------------------------------------------
# Constant matrices: pooling (with the three conv taps folded in) + expansion.
# ---------------------------------------------------------------------------
def _make_constants(H, W):
    HW, L = H * W, H + W
    j = np.arange(HW)
    h_idx, w_idx = j // W, j % W

    P = np.zeros((HW, L), np.float32)
    P[j, h_idx] = 1.0 / W                      # mean over W -> H profile
    P[j, H + w_idx] = 1.0 / H                  # mean over H -> W profile
    Pl = np.zeros_like(P); Pl[:, 1:] = P[:, :-1]     # profile at l-1 (zero pad)
    Pr = np.zeros_like(P); Pr[:, :-1] = P[:, 1:]     # profile at l+1 (zero pad)
    gap = np.full((HW, 1), 1.0 / HW, np.float32)
    Pext = np.concatenate([Pl, P, Pr, gap], axis=1)  # (HW, 3L+1)

    EhT = (h_idx[None, :] == np.arange(H)[:, None]).astype(np.float32)  # (H,HW)
    EwT = (w_idx[None, :] == np.arange(W)[:, None]).astype(np.float32)  # (W,HW)
    Ehw = np.concatenate([EhT, EwT], axis=0)                            # (L,HW)
    return jnp.asarray(Pext), jnp.asarray(Ehw)


# ---------------------------------------------------------------------------
# Per-generation sizing helpers.
# ---------------------------------------------------------------------------
def _vmem_capacity_bytes():
    try:
        info = pltpu.get_tpu_info()
        for name in ("vmem_capacity_bytes", "vmem_bytes", "vmem_size_bytes"):
            v = getattr(info, name, None)
            if v:
                return int(v)
    except Exception:
        pass
    return 64 * 2**20          # conservative default (v7x physical VMEM)


def _num_tensorcores():
    try:
        info = pltpu.get_tpu_info()
        for name in ("num_tensorcores", "tensorcore_count", "num_cores",
                     "cores_per_chip"):
            v = getattr(info, name, None)
            if v:
                return max(1, int(v))
    except Exception:
        pass
    return 1


def _choose_block_b(B, C, HW, itemsize, vmem_cap, n_cores):
    """Largest batch fold whose working set (pipelined in+out buffers plus
    in-kernel temporaries ~ 8 block copies) stays within ~half of VMEM; keep
    >= n_cores grid steps only when more than one TensorCore is present."""
    per_b = C * HW * itemsize
    bt = max(1, min(B, (vmem_cap // 16) // max(per_b, 1)))
    if n_cores >= 2 and B >= 2:
        bt = min(bt, max(1, B // n_cores))
    while bt > 1 and B % bt:
        bt -= 1
    return bt


# ---------------------------------------------------------------------------
# Wrapper
# ---------------------------------------------------------------------------
def mpca_pallas(x, params, *, block_b=None):
    B, C, H, W = x.shape
    if C % 8 != 0:
        raise ValueError(
            "mpca_pallas requires the channel count to be a multiple of 8 "
            f"(f32 sublane tiling); got C={C}.")
    HW, L = H * W, H + W
    x_flat = x.reshape(B, C, HW)               # lane-dense activation layout

    pext, ehw = _make_constants(H, W)

    # BN (eval) scales folded into the conv weights offline; only shifts remain.
    w3 = params["w_hw_fused"] * params["hw_scale"]
    wphw = params["w_phw"] * params["phw_scale"]
    wgap = params["w_gap"] * params["gap_scale"]
    shifts = jnp.concatenate(
        [params["hw_shift"], params["phw_shift"], params["gap_shift"]], axis=1)

    vmem_cap = _vmem_capacity_bytes()
    n_cores = _num_tensorcores()
    if block_b is None:
        block_b = _choose_block_b(B, C, HW, x.dtype.itemsize, vmem_cap, n_cores)
    assert B % block_b == 0, (B, block_b)
    grid = (B // block_b,)

    def full(a):
        nd = a.ndim
        return pl.BlockSpec(a.shape, lambda b, n=nd: (0,) * n)

    in_specs = [
        pl.BlockSpec((block_b, C, HW), lambda b: (b, 0, 0)),    # x (lane-dense)
        full(pext), full(ehw),                                  # constants
        full(w3), full(wphw), full(wgap), full(shifts),         # fused weights
    ]
    out_specs = pl.BlockSpec((block_b, C, HW), lambda b: (b, 0, 0))

    block_bytes = block_b * C * HW * x.dtype.itemsize
    const_bytes = 4 * sum(int(np.prod(a.shape))
                          for a in (pext, ehw, w3, wphw, wgap, shifts))
    want = 10 * block_bytes + 4 * const_bytes + (8 << 20)
    vmem_limit = int(min(vmem_cap * 3 // 4, max(32 << 20, want)))

    flops = B * (2 * C * HW * (3 * L + 1)      # pooling + conv taps + GAP
                 + 2 * C * HW * L              # gate expansion
                 + 2 * C * C * (4 * L + 1)     # channel-mix convs
                 + 6 * C * HW)                 # dense elementwise
    cost = pl.CostEstimate(
        flops=int(flops),
        transcendentals=int(B * C * (5 * L + 2)),
        bytes_accessed=int(2 * B * C * HW * x.dtype.itemsize + const_bytes))

    out_flat = pl.pallas_call(
        _make_kernel(H, W),
        out_shape=jax.ShapeDtypeStruct((B, C, HW), x.dtype),
        grid_spec=pltpu.PrefetchScalarGridSpec(
            num_scalar_prefetch=0,
            grid=grid,
            in_specs=in_specs,
            out_specs=out_specs,
        ),
        compiler_params=pltpu.CompilerParams(
            dimension_semantics=("parallel",),
            vmem_limit_bytes=vmem_limit),
        cost_estimate=cost,
        input_output_aliases={0: 0},           # write the result in place over x
    )(x_flat, pext, ehw, w3, wphw, wgap, shifts)

    return out_flat.reshape(B, C, H, W)


# ---------------------------------------------------------------------------
# Parameter construction (deterministic, synthetic) + BN folding (eval mode).
# ---------------------------------------------------------------------------
def make_params(key, C):
    ks = jax.random.split(key, 12)
    eps = 1e-5

    def bn(k1, k2, k3, k4):
        gamma = 1.0 + 0.1 * jax.random.normal(k1, (C,), jnp.float32)
        beta = 0.1 * jax.random.normal(k2, (C,), jnp.float32)
        mean = 0.1 * jax.random.normal(k3, (C,), jnp.float32)
        var = 0.5 + jax.random.uniform(k4, (C,), jnp.float32)
        scale = gamma / jnp.sqrt(var + eps)
        shift = beta - mean * scale
        return scale.reshape(C, 1), shift.reshape(C, 1)

    # conv_hw: torch weight (C_out, C_in, 3, 1)
    w_hw_torch = (jax.random.normal(ks[0], (C, C, 3, 1), jnp.float32)
                  / np.sqrt(C * 3))
    hw_scale, hw_shift = bn(ks[1], ks[2], ks[3], ks[4])

    # conv_pool_hw: 1x1 conv (C, C)
    w_phw = jax.random.normal(ks[5], (C, C), jnp.float32) / np.sqrt(C)
    phw_scale, phw_shift = bn(ks[6], ks[7], ks[8], ks[9])

    # gap conv: 1x1 conv (C, C)
    w_gap = jax.random.normal(ks[10], (C, C), jnp.float32) / np.sqrt(C)
    gap_scale, gap_shift = bn(ks[11], ks[0], ks[5], ks[10])

    # Fused 3-tap conv weight: (C_out, 3*C_in) with column blocks
    # [tap0 | tap1 | tap2] matching the stacked [in[l-1]; in[l]; in[l+1]]
    # operand in the kernel.
    w_hw_fused = jnp.transpose(w_hw_torch[:, :, :, 0], (0, 2, 1)).reshape(C, 3 * C)

    return {
        "w_hw_torch": w_hw_torch, "w_hw_fused": w_hw_fused,
        "hw_scale": hw_scale, "hw_shift": hw_shift,
        "w_phw": w_phw, "phw_scale": phw_scale, "phw_shift": phw_shift,
        "w_gap": w_gap, "gap_scale": gap_scale, "gap_shift": gap_shift,
    }


# ---------------------------------------------------------------------------
# Pure-JAX reference (mirrors the PyTorch forward, eval-mode BN).
# ---------------------------------------------------------------------------
def mpca_reference(x, p):
    B, C, H, W = x.shape
    dn = ("NCHW", "OIHW", "NCHW")
    HIGH = lax.Precision.HIGHEST

    pool_h = jnp.mean(x, axis=3, keepdims=True)                   # (B,C,H,1)
    pool_w = jnp.mean(x, axis=2, keepdims=True)                   # (B,C,1,W)
    pool_w_t = jnp.transpose(pool_w, (0, 1, 3, 2))                # (B,C,W,1)
    pool_ch = jnp.mean(x, axis=(2, 3), keepdims=True)             # (B,C,1,1)

    hw = jnp.concatenate([pool_h, pool_w_t], axis=2)              # (B,C,L,1)
    conv = lax.conv_general_dilated(hw, p["w_hw_torch"], (1, 1),
                                    ((1, 1), (0, 0)), dimension_numbers=dn,
                                    precision=HIGH)
    y = conv * p["hw_scale"].reshape(1, C, 1, 1) + p["hw_shift"].reshape(1, C, 1, 1)
    hw_feat = y * jax.nn.sigmoid(y)

    z = lax.conv_general_dilated(hw_feat, p["w_phw"].reshape(C, C, 1, 1),
                                 (1, 1), ((0, 0), (0, 0)), dimension_numbers=dn,
                                 precision=HIGH)
    z = z * p["phw_scale"].reshape(1, C, 1, 1) + p["phw_shift"].reshape(1, C, 1, 1)
    z = z * jax.nn.sigmoid(z)
    weight = jax.nn.sigmoid(z)

    h_feat = hw_feat[:, :, :H] * weight[:, :, :H]                 # (B,C,H,1)
    w_feat = hw_feat[:, :, H:] * weight[:, :, H:]                 # (B,C,W,1)

    g = lax.conv_general_dilated(pool_ch, p["w_gap"].reshape(C, C, 1, 1),
                                 (1, 1), ((0, 0), (0, 0)), dimension_numbers=dn,
                                 precision=HIGH)
    g = g * p["gap_scale"].reshape(1, C, 1, 1) + p["gap_shift"].reshape(1, C, 1, 1)
    g = g * jax.nn.sigmoid(g)
    ch_feat = g * jnp.mean(weight, axis=2, keepdims=True)         # (B,C,1,1)

    sig_h = jax.nn.sigmoid(h_feat)
    sig_w = jax.nn.sigmoid(jnp.transpose(w_feat, (0, 1, 3, 2)))
    sig_ch = jax.nn.sigmoid(ch_feat)
    return x * sig_h * sig_w * sig_ch + x


if __name__ == "__main__":
    B, C, H, W = 2, 8, 16, 16
    key = jax.random.PRNGKey(0)
    k_x, k_p = jax.random.split(key)

    x = jax.random.normal(k_x, (B, C, H, W), jnp.float32)
    params = make_params(k_p, C)

    ref = jax.block_until_ready(mpca_reference(x, params))

    out = mpca_pallas(x, params)
    out = jax.block_until_ready(out)

    np.testing.assert_allclose(np.asarray(out), np.asarray(ref),
                               rtol=2e-4, atol=2e-4)

    print("KERNEL_OK")
</pallas_src>

<mosaic_0001>
module attributes {stable_mosaic.version = 11 : i64} {
  func.func @kernel(%arg0: i32, %arg1: memref<2x8x256xf32, #tpu.memory_space<vmem>>, %arg2: memref<256x97xf32, #tpu.memory_space<vmem>>, %arg3: memref<32x256xf32, #tpu.memory_space<vmem>>, %arg4: memref<8x24xf32, #tpu.memory_space<vmem>>, %arg5: memref<8x8xf32, #tpu.memory_space<vmem>>, %arg6: memref<8x8xf32, #tpu.memory_space<vmem>>, %arg7: memref<8x3xf32, #tpu.memory_space<vmem>>, %arg8: memref<2x8x256xf32, #tpu.memory_space<vmem>>) attributes {dimension_semantics = [#tpu.dimension_semantics<parallel>], iteration_bounds = array<i64: 1>, scalar_prefetch = 0 : i64, scratch_operands = 0 : i64, tpu.core_type = #tpu.core_type<tc>, window_params = [{transform_indices = @transform_0, window_bounds = array<i64: 2, 8, 256>}, {pipeline_mode = #tpu.pipeline_mode<synchronous>, transform_indices = @transform_1, window_bounds = array<i64: 256, 97>}, {pipeline_mode = #tpu.pipeline_mode<synchronous>, transform_indices = @transform_2, window_bounds = array<i64: 32, 256>}, {pipeline_mode = #tpu.pipeline_mode<synchronous>, transform_indices = @transform_3, window_bounds = array<i64: 8, 24>}, {pipeline_mode = #tpu.pipeline_mode<synchronous>, transform_indices = @transform_4, window_bounds = array<i64: 8, 8>}, {pipeline_mode = #tpu.pipeline_mode<synchronous>, transform_indices = @transform_5, window_bounds = array<i64: 8, 8>}, {pipeline_mode = #tpu.pipeline_mode<synchronous>, transform_indices = @transform_6, window_bounds = array<i64: 8, 3>}, {transform_indices = @transform_7, window_bounds = array<i64: 2, 8, 256>}]} {
    %c0 = arith.constant 0 : index
    %c0_0 = arith.constant 0 : index
    %c0_1 = arith.constant 0 : index
    %0 = vector.load %arg1[%c0, %c0_0, %c0_1] : memref<2x8x256xf32, #tpu.memory_space<vmem>>, vector<2x8x256xf32>
    %c0_2 = arith.constant 0 : index
    %c0_3 = arith.constant 0 : index
    %1 = vector.load %arg2[%c0_2, %c0_3] : memref<256x97xf32, #tpu.memory_space<vmem>>, vector<256x97xf32>
    %c0_4 = arith.constant 0 : index
    %c0_5 = arith.constant 0 : index
    %2 = vector.load %arg3[%c0_4, %c0_5] : memref<32x256xf32, #tpu.memory_space<vmem>>, vector<32x256xf32>
    %c0_6 = arith.constant 0 : index
    %c0_7 = arith.constant 0 : index
    %3 = vector.load %arg4[%c0_6, %c0_7] : memref<8x24xf32, #tpu.memory_space<vmem>>, vector<8x24xf32>
    %c0_8 = arith.constant 0 : index
    %c0_9 = arith.constant 0 : index
    %4 = vector.load %arg5[%c0_8, %c0_9] : memref<8x8xf32, #tpu.memory_space<vmem>>, vector<8x8xf32>
    %c0_10 = arith.constant 0 : index
    %c0_11 = arith.constant 0 : index
    %5 = vector.load %arg6[%c0_10, %c0_11] : memref<8x8xf32, #tpu.memory_space<vmem>>, vector<8x8xf32>
    %c0_12 = arith.constant 0 : index
    %c0_13 = arith.constant 0 : index
    %6 = vector.load %arg7[%c0_12, %c0_13] : memref<8x3xf32, #tpu.memory_space<vmem>>, vector<8x3xf32>
    %7 = vector.extract_strided_slice %6 {offsets = [0, 0], sizes = [8, 1], strides = [1, 1]} : vector<8x3xf32> to vector<8x1xf32>
    %8 = vector.shape_cast %7 : vector<8x1xf32> to vector<1x8x1xf32>
    %9 = vector.extract_strided_slice %6 {offsets = [0, 1], sizes = [8, 1], strides = [1, 1]} : vector<8x3xf32> to vector<8x1xf32>
    %10 = vector.shape_cast %9 : vector<8x1xf32> to vector<1x8x1xf32>
    %11 = vector.extract_strided_slice %6 {offsets = [0, 2], sizes = [8, 1], strides = [1, 1]} : vector<8x3xf32> to vector<8x1xf32>
    %12 = vector.shape_cast %11 : vector<8x1xf32> to vector<1x8x1xf32>
    %13 = vector.shape_cast %3 : vector<8x24xf32> to vector<1x8x24xf32>
    %14 = vector.shape_cast %13 : vector<1x8x24xf32> to vector<1x8x24xf32>
    %15 = vector.broadcast %14 : vector<1x8x24xf32> to vector<2x8x24xf32>
    %16 = vector.shape_cast %4 : vector<8x8xf32> to vector<1x8x8xf32>
    %17 = vector.shape_cast %16 : vector<1x8x8xf32> to vector<1x8x8xf32>
    %18 = vector.broadcast %17 : vector<1x8x8xf32> to vector<2x8x8xf32>
    %19 = vector.shape_cast %5 : vector<8x8xf32> to vector<1x8x8xf32>
    %20 = vector.shape_cast %19 : vector<1x8x8xf32> to vector<1x8x8xf32>
    %21 = vector.broadcast %20 : vector<1x8x8xf32> to vector<2x8x8xf32>
    %22 = vector.shape_cast %0 : vector<2x8x256xf32> to vector<16x256xf32>
    %cst = arith.constant dense<0.000000e+00> : vector<16x97xf32>
    %23 = tpu.matmul %22, %1, %cst {dimension_numbers = #tpu.dot_dimension_numbers<[1], [0], [0], [1], [0, 0, 1, 1], [], []>, precision = #tpu.contract_precision<fp32>} : vector<16x256xf32>, vector<256x97xf32>, vector<16x97xf32> -> vector<16x97xf32>
    %24 = vector.shape_cast %23 : vector<16x97xf32> to vector<2x8x97xf32>
    %25 = vector.extract_strided_slice %24 {offsets = [0, 0, 0], sizes = [2, 8, 32], strides = [1, 1, 1]} : vector<2x8x97xf32> to vector<2x8x32xf32>
    %26 = vector.extract_strided_slice %24 {offsets = [0, 0, 32], sizes = [2, 8, 32], strides = [1, 1, 1]} : vector<2x8x97xf32> to vector<2x8x32xf32>
    %27 = vector.extract_strided_slice %24 {offsets = [0, 0, 64], sizes = [2, 8, 32], strides = [1, 1, 1]} : vector<2x8x97xf32> to vector<2x8x32xf32>
    %28 = vector.extract_strided_slice %24 {offsets = [0, 0, 96], sizes = [2, 8, 1], strides = [1, 1, 1]} : vector<2x8x97xf32> to vector<2x8x1xf32>
    %29 = tpu.concatenate %25, %26, %27 in 1 : vector<2x8x32xf32>, vector<2x8x32xf32>, vector<2x8x32xf32> -> vector<2x24x32xf32>
    %cst_14 = arith.constant dense<0.000000e+00> : vector<2x8x32xf32>
    %30 = tpu.matmul %15, %29, %cst_14 {dimension_numbers = #tpu.dot_dimension_numbers<[2], [1], [1], [2], [0, 0, 0, 1, 1, 2], [0], [0]>, precision = #tpu.contract_precision<fp32>} : vector<2x8x24xf32>, vector<2x24x32xf32>, vector<2x8x32xf32> -> vector<2x8x32xf32>
    %31 = vector.broadcast %8 : vector<1x8x1xf32> to vector<2x8x32xf32>
    %32 = arith.addf %30, %31 : vector<2x8x32xf32>
    %33 = arith.negf %32 : vector<2x8x32xf32>
    %34 = math.exp %33 : vector<2x8x32xf32>
    %cst_15 = arith.constant 1.000000e+00 : f32
    %35 = vector.broadcast %cst_15 : f32 to vector<2x8x32xf32>
    %36 = arith.addf %35, %34 : vector<2x8x32xf32>
    %37 = arith.divf %35, %36 : vector<2x8x32xf32>
    %38 = arith.mulf %32, %37 : vector<2x8x32xf32>
    %cst_16 = arith.constant dense<0.000000e+00> : vector<2x8x32xf32>
    %39 = tpu.matmul %18, %38, %cst_16 {dimension_numbers = #tpu.dot_dimension_numbers<[2], [1], [1], [2], [0, 0, 0, 1, 1, 2], [0], [0]>, precision = #tpu.contract_precision<fp32>} : vector<2x8x8xf32>, vector<2x8x32xf32>, vector<2x8x32xf32> -> vector<2x8x32xf32>
    %40 = vector.broadcast %10 : vector<1x8x1xf32> to vector<2x8x32xf32>
    %41 = arith.addf %39, %40 : vector<2x8x32xf32>
    %42 = arith.negf %41 : vector<2x8x32xf32>
    %43 = math.exp %42 : vector<2x8x32xf32>
    %cst_17 = arith.constant 1.000000e+00 : f32
    %44 = vector.broadcast %cst_17 : f32 to vector<2x8x32xf32>
    %45 = arith.addf %44, %43 : vector<2x8x32xf32>
    %46 = arith.divf %44, %45 : vector<2x8x32xf32>
    %47 = arith.mulf %41, %46 : vector<2x8x32xf32>
    %48 = arith.negf %47 : vector<2x8x32xf32>
    %49 = math.exp %48 : vector<2x8x32xf32>
    %cst_18 = arith.constant 1.000000e+00 : f32
    %50 = vector.broadcast %cst_18 : f32 to vector<2x8x32xf32>
    %51 = arith.addf %50, %49 : vector<2x8x32xf32>
    %52 = arith.divf %50, %51 : vector<2x8x32xf32>
    %cst_19 = arith.constant dense<0.000000e+00> : vector<2x8x1xf32>
    %53 = tpu.matmul %21, %28, %cst_19 {dimension_numbers = #tpu.dot_dimension_numbers<[2], [1], [1], [2], [0, 0, 0, 1, 1, 2], [0], [0]>, precision = #tpu.contract_precision<fp32>} : vector<2x8x8xf32>, vector<2x8x1xf32>, vector<2x8x1xf32> -> vector<2x8x1xf32>
    %54 = vector.broadcast %12 : vector<1x8x1xf32> to vector<2x8x1xf32>
    %55 = arith.addf %53, %54 : vector<2x8x1xf32>
    %56 = arith.negf %55 : vector<2x8x1xf32>
    %57 = math.exp %56 : vector<2x8x1xf32>
    %cst_20 = arith.constant 1.000000e+00 : f32
    %58 = vector.broadcast %cst_20 : f32 to vector<2x8x1xf32>
    %59 = arith.addf %58, %57 : vector<2x8x1xf32>
    %60 = arith.divf %58, %59 : vector<2x8x1xf32>
    %61 = arith.mulf %55, %60 : vector<2x8x1xf32>
    %cst_21 = arith.constant dense<0.000000e+00> : vector<2x8xf32>
    %62 = vector.multi_reduction <add>, %52, %cst_21 [2] : vector<2x8x32xf32> to vector<2x8xf32>
    %63 = vector.shape_cast %62 : vector<2x8xf32> to vector<2x8x1xf32>
    %cst_22 = arith.constant 3.200000e+01 : f32
    %64 = vector.broadcast %cst_22 : f32 to vector<2x8x1xf32>
    %65 = arith.divf %63, %64 : vector<2x8x1xf32>
    %66 = arith.mulf %61, %65 : vector<2x8x1xf32>
    %67 = vector.extract_strided_slice %38 {offsets = [0, 0, 0], sizes = [2, 8, 16], strides = [1, 1, 1]} : vector<2x8x32xf32> to vector<2x8x16xf32>
    %68 = vector.extract_strided_slice %52 {offsets = [0, 0, 0], sizes = [2, 8, 16], strides = [1, 1, 1]} : vector<2x8x32xf32> to vector<2x8x16xf32>
    %69 = arith.mulf %67, %68 : vector<2x8x16xf32>
    %70 = vector.extract_strided_slice %38 {offsets = [0, 0, 16], sizes = [2, 8, 16], strides = [1, 1, 1]} : vector<2x8x32xf32> to vector<2x8x16xf32>
    %71 = vector.extract_strided_slice %52 {offsets = [0, 0, 16], sizes = [2, 8, 16], strides = [1, 1, 1]} : vector<2x8x32xf32> to vector<2x8x16xf32>
    %72 = arith.mulf %70, %71 : vector<2x8x16xf32>
    %73 = arith.negf %69 : vector<2x8x16xf32>
    %74 = math.exp %73 : vector<2x8x16xf32>
    %cst_23 = arith.constant 1.000000e+00 : f32
    %75 = vector.broadcast %cst_23 : f32 to vector<2x8x16xf32>
    %76 = arith.addf %75, %74 : vector<2x8x16xf32>
    %77 = arith.divf %75, %76 : vector<2x8x16xf32>
    %78 = arith.negf %66 : vector<2x8x1xf32>
    %79 = math.exp %78 : vector<2x8x1xf32>
    %cst_24 = arith.constant 1.000000e+00 : f32
    %80 = vector.broadcast %cst_24 : f32 to vector<2x8x1xf32>
    %81 = arith.addf %80, %79 : vector<2x8x1xf32>
    %82 = arith.divf %80, %81 : vector<2x8x1xf32>
    %83 = vector.broadcast %82 : vector<2x8x1xf32> to vector<2x8x16xf32>
    %84 = arith.mulf %77, %83 : vector<2x8x16xf32>
    %85 = arith.negf %72 : vector<2x8x16xf32>
    %86 = math.exp %85 : vector<2x8x16xf32>
    %cst_25 = arith.constant 1.000000e+00 : f32
    %87 = vector.broadcast %cst_25 : f32 to vector<2x8x16xf32>
    %88 = arith.addf %87, %86 : vector<2x8x16xf32>
    %89 = arith.divf %87, %88 : vector<2x8x16xf32>
    %90 = vector.shape_cast %84 : vector<2x8x16xf32> to vector<16x16xf32>
    %91 = vector.extract_strided_slice %2 {offsets = [0, 0], sizes = [16, 256], strides = [1, 1]} : vector<32x256xf32> to vector<16x256xf32>
    %cst_26 = arith.constant dense<0.000000e+00> : vector<16x256xf32>
    %92 = tpu.matmul %90, %91, %cst_26 {dimension_numbers = #tpu.dot_dimension_numbers<[1], [0], [0], [1], [0, 0, 1, 1], [], []>, precision = #tpu.contract_precision<fp32>} : vector<16x16xf32>, vector<16x256xf32>, vector<16x256xf32> -> vector<16x256xf32>
    %93 = vector.shape_cast %89 : vector<2x8x16xf32> to vector<16x16xf32>
    %94 = vector.extract_strided_slice %2 {offsets = [16, 0], sizes = [16, 256], strides = [1, 1]} : vector<32x256xf32> to vector<16x256xf32>
    %cst_27 = arith.constant dense<0.000000e+00> : vector<16x256xf32>
    %95 = tpu.matmul %93, %94, %cst_27 {dimension_numbers = #tpu.dot_dimension_numbers<[1], [0], [0], [1], [0, 0, 1, 1], [], []>, precision = #tpu.contract_precision<fp32>} : vector<16x16xf32>, vector<16x256xf32>, vector<16x256xf32> -> vector<16x256xf32>
    %96 = arith.mulf %92, %95 : vector<16x256xf32>
    %97 = vector.shape_cast %96 : vector<16x256xf32> to vector<2x8x256xf32>
    %cst_28 = arith.constant 1.000000e+00 : f32
    %98 = vector.broadcast %cst_28 : f32 to vector<2x8x256xf32>
    %99 = arith.addf %97, %98 : vector<2x8x256xf32>
    %100 = arith.mulf %0, %99 : vector<2x8x256xf32>
    %c0_29 = arith.constant 0 : index
    %c0_30 = arith.constant 0 : index
    %c0_31 = arith.constant 0 : index
    %101 = vector.load %arg8[%c0_29, %c0_30, %c0_31] : memref<2x8x256xf32, #tpu.memory_space<vmem>>, vector<2x8x256xf32>
    tpu.vector_store %arg8[%c0_29, %c0_30, %c0_31], %100 {strides = array<i32>} : memref<2x8x256xf32, #tpu.memory_space<vmem>>, vector<2x8x256xf32>,
    return
  }
  func.func @transform_0(%arg0: i32) -> (i32, i32, i32) {
    %c0_i32 = arith.constant 0 : i32
    %c0_i32_0 = arith.constant 0 : i32
    %c0_i32_1 = arith.constant 0 : i32
    return %arg0, %c0_i32, %c0_i32_0 : i32, i32, i32
  }
  func.func @transform_1(%arg0: i32) -> (i32, i32) {
    %c0_i32 = arith.constant 0 : i32
    %c0_i32_0 = arith.constant 0 : i32
    %c0_i32_1 = arith.constant 0 : i32
    return %c0_i32, %c0_i32_0 : i32, i32
  }
  func.func @transform_2(%arg0: i32) -> (i32, i32) {
    %c0_i32 = arith.constant 0 : i32
    %c0_i32_0 = arith.constant 0 : i32
    %c0_i32_1 = arith.constant 0 : i32
    return %c0_i32, %c0_i32_0 : i32, i32
  }
  func.func @transform_3(%arg0: i32) -> (i32, i32) {
    %c0_i32 = arith.constant 0 : i32
    %c0_i32_0 = arith.constant 0 : i32
    %c0_i32_1 = arith.constant 0 : i32
    return %c0_i32, %c0_i32_0 : i32, i32
  }
  func.func @transform_4(%arg0: i32) -> (i32, i32) {
    %c0_i32 = arith.constant 0 : i32
    %c0_i32_0 = arith.constant 0 : i32
    %c0_i32_1 = arith.constant 0 : i32
    return %c0_i32, %c0_i32_0 : i32, i32
  }
  func.func @transform_5(%arg0: i32) -> (i32, i32) {
    %c0_i32 = arith.constant 0 : i32
    %c0_i32_0 = arith.constant 0 : i32
    %c0_i32_1 = arith.constant 0 : i32
    return %c0_i32, %c0_i32_0 : i32, i32
  }
  func.func @transform_6(%arg0: i32) -> (i32, i32) {
    %c0_i32 = arith.constant 0 : i32
    %c0_i32_0 = arith.constant 0 : i32
    %c0_i32_1 = arith.constant 0 : i32
    return %c0_i32, %c0_i32_0 : i32, i32
  }
  func.func @transform_7(%arg0: i32) -> (i32, i32, i32) {
    %c0_i32 = arith.constant 0 : i32
    %c0_i32_0 = arith.constant 0 : i32
    %c0_i32_1 = arith.constant 0 : i32
    return %arg0, %c0_i32, %c0_i32_0 : i32, i32, i32
  }
}

</mosaic_0001>

<llo_original>
// kernel: tpu_custom_call.1
$region0: #{tpu_custom_call.1}
  #allocation0 [shape = 'u32[]', space=smem, size = 0x4, offset = 0x4, fixed_abs, tag = 'smem constant byte address 0x4 - core index']
  #allocation1 [shape = 'u32[72,128]{1,0:T(1,128)}', space=vmem, size = 0x9000, scoped, tag = 'internal scratch']
  %s0 = inlined_call_operand.hbm [shape: f32[2,8,256], index: 0, kind: input, shape index: {}, may-alias: {0,7}]
  %s1 = inlined_call_operand.vmem [shape: f32[256,97], index: 1, kind: input, shape index: {}]
  %s2 = inlined_call_operand.vmem [shape: f32[32,256], index: 2, kind: input, shape index: {}]
  %s3 = inlined_call_operand.vmem [shape: f32[8,24], index: 3, kind: input, shape index: {}]
  %s4 = inlined_call_operand.vmem [shape: f32[8,8], index: 4, kind: input, shape index: {}]
  %s5 = inlined_call_operand.vmem [shape: f32[8,8], index: 5, kind: input, shape index: {}]
  %s6 = inlined_call_operand.vmem [shape: f32[8,3], index: 6, kind: input, shape index: {}]
  %s7 = inlined_call_operand.hbm [shape: f32[2,8,256], index: 7, kind: output, shape index: {}, may-alias: {0,7}]
  %s8 = sld [smem:[#allocation0]]
  $region42: #{tpu_custom_call.1} parent=0
    _
  %s10 = ssub.s32 1, %s8
  %s11 = scalar_select 0, %s10, %s8
  $region1: #{tpu_custom_call.1} parent=0
    #allocation2 [shape = 'u8[16384]{0}', space=vmem, size = 0x4000, scoped, tag = 'input window, operand 0, single buffered']
    #allocation3 [shape = 's32[1]{0}', space=sflag, size = 0x4, scoped, tag = 'scoped memory for tpu_custom_call.1']
    #allocation4 [shape = 's32[1]{0}', space=sflag, size = 0x4, scoped, tag = 'scoped memory for tpu_custom_call.1']
    #allocation5 [shape = 'u8[16384]{0}', space=vmem, size = 0x4000, scoped, tag = 'output window, operand 0, single buffered']
    %12 = vsyncpa [#allocation3], 0
    %13 = vsyncpa [#allocation4], 0
    // Predicated region
    $region2: #{tpu_custom_call.1} parent=1 // pred_check
      _
    $region3: #{tpu_custom_call.1} parent=1 // pred_check_branch
      %15 = sbr.rel (0) target = $region5
    $region4: #{tpu_custom_call.1} parent=1 // pred_region
      %17 = vsyncadd [#allocation3], 0
      %s18 = sshll.u32 %s0, 4
      %s19 = int_to_ptr.hbm [resolvable:$true] %s18
      %s20 = sshll.u32 [#allocation2], 4
      %s21 = int_to_ptr.vmem [resolvable:$true] %s20
      %26 = dma.hbm_to_vmem [thread:$0]  %s19, 512, %s21, [#allocation3], 256, 256, 16
    $region5: #{tpu_custom_call.1} parent=1 // pred_fallthru
      _
    // Predicated region
    $region6: #{tpu_custom_call.1} parent=1 // pred_check
      _
    $region7: #{tpu_custom_call.1} parent=1 // pred_check_branch
      %28 = sbr.rel (0) target = $region9
    $region8: #{tpu_custom_call.1} parent=1 // pred_region
      _
    $region9: #{tpu_custom_call.1} parent=1 // pred_fallthru
      _
    // Predicated region
    $region10: #{tpu_custom_call.1} parent=1 // pred_check
      _
    $region11: #{tpu_custom_call.1} parent=1 // pred_check_branch
      %30 = sbr.rel (0) target = $region13
    $region12: #{tpu_custom_call.1} parent=1 // pred_region
      _
    $region13: #{tpu_custom_call.1} parent=1 // pred_fallthru
      _
    // Predicated region
    $region14: #{tpu_custom_call.1} parent=1 // pred_check
      _
    $region15: #{tpu_custom_call.1} parent=1 // pred_check_branch
      %32 = sbr.rel (0) target = $region17
    $region16: #{tpu_custom_call.1} parent=1 // pred_region
      _
    $region17: #{tpu_custom_call.1} parent=1 // pred_fallthru
      _
    // Predicated region
    $region18: #{tpu_custom_call.1} parent=1 // pred_check
      _
    $region19: #{tpu_custom_call.1} parent=1 // pred_check_branch
      %34 = sbr.rel (0) target = $region21
    $region20: #{tpu_custom_call.1} parent=1 // pred_region
      _
    $region21: #{tpu_custom_call.1} parent=1 // pred_fallthru
      _
    // Predicated region
    $region22: #{tpu_custom_call.1} parent=1 // pred_check
      _
    $region23: #{tpu_custom_call.1} parent=1 // pred_check_branch
      %36 = sbr.rel (0) target = $region25
    $region24: #{tpu_custom_call.1} parent=1 // pred_region
      _
    $region25: #{tpu_custom_call.1} parent=1 // pred_fallthru
      _
    // Predicated region
    $region26: #{tpu_custom_call.1} parent=1 // pred_check
      _
    $region27: #{tpu_custom_call.1} parent=1 // pred_check_branch
      %38 = sbr.rel (0) target = $region29
    $region28: #{tpu_custom_call.1} parent=1 // pred_region
      _
    $region29: #{tpu_custom_call.1} parent=1 // pred_fallthru
      _
    // Predicated region
    $region30: #{tpu_custom_call.1} parent=1 // pred_check
      _
    $region31: #{tpu_custom_call.1} parent=1 // pred_check_branch
      %40 = sbr.rel (0) target = $region33
    $region32: #{tpu_custom_call.1} parent=1 // pred_region
      %42 = dma.done [#allocation3], 512
    $region33: #{tpu_custom_call.1} parent=1 // pred_fallthru
      _
    %v43 = vld [vmem:[#allocation2] sm:$0xff]
    %v44 = vld [vmem:[#allocation2 + $0x8] sm:$0xff]
    %v45 = vld [vmem:[#allocation2 + $0x10] sm:$0xff]
    %v46 = vld [vmem:[#allocation2 + $0x18] sm:$0xff]
    %v47 = vld [vmem:[%s1] sm:$0xff]
    %v48 = vld [vmem:[%s1 + $0x8] sm:$0xff]
    %v49 = vld [vmem:[%s1 + $0x10] sm:$0xff]
    %v50 = vld [vmem:[%s1 + $0x18] sm:$0xff]
    %v51 = vld [vmem:[%s1 + $0x20] sm:$0xff]
    %v52 = vld [vmem:[%s1 + $0x28] sm:$0xff]
    %v53 = vld [vmem:[%s1 + $0x30] sm:$0xff]
    %v54 = vld [vmem:[%s1 + $0x38] sm:$0xff]
    %v55 = vld [vmem:[%s1 + $0x40] sm:$0xff]
    %v56 = vld [vmem:[%s1 + $0x48] sm:$0xff]
    %v57 = vld [vmem:[%s1 + $0x50] sm:$0xff]
    %v58 = vld [vmem:[%s1 + $0x58] sm:$0xff]
    %v59 = vld [vmem:[%s1 + $0x60] sm:$0xff]
    %v60 = vld [vmem:[%s1 + $0x68] sm:$0xff]
    %v61 = vld [vmem:[%s1 + $0x70] sm:$0xff]
    %v62 = vld [vmem:[%s1 + $0x78] sm:$0xff]
    %v63 = vld [vmem:[%s1 + $0x80] sm:$0xff]
    %v64 = vld [vmem:[%s1 + $0x88] sm:$0xff]
    %v65 = vld [vmem:[%s1 + $0x90] sm:$0xff]
    %v66 = vld [vmem:[%s1 + $0x98] sm:$0xff]
    %v67 = vld [vmem:[%s1 + $0xa0] sm:$0xff]
    %v68 = vld [vmem:[%s1 + $0xa8] sm:$0xff]
    %v69 = vld [vmem:[%s1 + $0xb0] sm:$0xff]
    %v70 = vld [vmem:[%s1 + $0xb8] sm:$0xff]
    %v71 = vld [vmem:[%s1 + $0xc0] sm:$0xff]
    %v72 = vld [vmem:[%s1 + $0xc8] sm:$0xff]
    %v73 = vld [vmem:[%s1 + $0xd0] sm:$0xff]
    %v74 = vld [vmem:[%s1 + $0xd8] sm:$0xff]
    %v75 = vld [vmem:[%s1 + $0xe0] sm:$0xff]
    %v76 = vld [vmem:[%s1 + $0xe8] sm:$0xff]
    %v77 = vld [vmem:[%s1 + $0xf0] sm:$0xff]
    %v78 = vld [vmem:[%s1 + $0xf8] sm:$0xff]
    %v79 = vld [vmem:[%s2] sm:$0xff]
    %v80 = vld [vmem:[%s2 + $0x8] sm:$0xff]
    %v81 = vld [vmem:[%s2 + $0x10] sm:$0xff]
    %v82 = vld [vmem:[%s2 + $0x18] sm:$0xff]
    %v83 = vld [vmem:[%s2 + $0x20] sm:$0xff]
    %v84 = vld [vmem:[%s2 + $0x28] sm:$0xff]
    %v85 = vld [vmem:[%s2 + $0x30] sm:$0xff]
    %v86 = vld [vmem:[%s2 + $0x38] sm:$0xff]
    %v87 = vld [vmem:[%s3] sm:$0xff]
    %v88 = vld [vmem:[%s4] sm:$0xff]
    %v89 = vld [vmem:[%s5] sm:$0xff]
    %v90 = vld [vmem:[%s6] sm:$0xff]
    %v91 = vand.u32 %v62, 4294901760
    %92 = vmatpush.msra.mxu0 %v91
    %v93 = vand.u32 %v61, 4294901760
    %94 = vmatpush.msra.mxu0 %v93
    %v95 = vand.u32 %v60, 4294901760
    %96 = vmatpush.msra.mxu0 %v95
    %v97 = vand.u32 %v59, 4294901760
    %98 = vmatpush.msra.mxu0 %v97
    %v99 = vand.u32 %v58, 4294901760
    %100 = vmatpush.msra.mxu0 %v99
    %v101 = vand.u32 %v57, 4294901760
    %102 = vmatpush.msra.mxu0 %v101
    %v103 = vand.u32 %v56, 4294901760
    %104 = vmatpush.msra.mxu0 %v103
    %v105 = vand.u32 %v55, 4294901760
    %106 = vmatpush.msra.mxu0 %v105
    %v107 = vand.u32 %v54, 4294901760
    %108 = vmatpush.msra.mxu0 %v107
    %v109 = vand.u32 %v53, 4294901760
    %110 = vmatpush.msra.mxu0 %v109
    %v111 = vand.u32 %v52, 4294901760
    %112 = vmatpush.msra.mxu0 %v111
    %v113 = vand.u32 %v51, 4294901760
    %114 = vmatpush.msra.mxu0 %v113
    %v115 = vand.u32 %v50, 4294901760
    %116 = vmatpush.msra.mxu0 %v115
    %v117 = vand.u32 %v49, 4294901760
    %118 = vmatpush.msra.mxu0 %v117
    %v119 = vand.u32 %v48, 4294901760
    %120 = vmatpush.msra.mxu0 %v119
    %v121 = vand.u32 %v47, 4294901760
    %122 = vmatpush.msra.mxu0 %v121
    %v123 = vand.u32 %v43, 4294901760
    %v124 = vsub.f32 %v43, %v123
    %v125 = vand.u32 %v124, 4294901760
    %v126 = vsub.f32 %v124, %v125
    %v127 = vand.u32 %v126, 4294901760
    %128 = vmatmul.f32.gmra.mxu0 %v127
    %v129 = vpop.f32.mrf.mxu0
    %v130 = vadd.f32 0.0, %v129
    %v131 = vand.u32 %v45, 4294901760
    %v132 = vsub.f32 %v45, %v131
    %v133 = vand.u32 %v132, 4294901760
    %v134 = vsub.f32 %v132, %v133
    %v135 = vand.u32 %v134, 4294901760
    %136 = vmatmul.f32.gmra.mxu0 %v135
    %v137 = vpop.f32.mrf.mxu0
    %v138 = vadd.f32 0.0, %v137
    %139 = vdwg.mxu0
    %v140 = vand.u32 %v62, 4294901760
    %v141 = vsub.f32 %v62, %v140
    %v142 = vand.u32 %v141, 4294901760
    %v143 = vsub.f32 %v141, %v142
    %v144 = vand.u32 %v143, 4294901760
    %145 = vmatpush.msra.mxu0 %v144
    %v146 = vand.u32 %v61, 4294901760
    %v147 = vsub.f32 %v61, %v146
    %v148 = vand.u32 %v147, 4294901760
    %v149 = vsub.f32 %v147, %v148
    %v150 = vand.u32 %v149, 4294901760
    %151 = vmatpush.msra.mxu0 %v150
    %v152 = vand.u32 %v60, 4294901760
    %v153 = vsub.f32 %v60, %v152
    %v154 = vand.u32 %v153, 4294901760
    %v155 = vsub.f32 %v153, %v154
    %v156 = vand.u32 %v155, 4294901760
    %157 = vmatpush.msra.mxu0 %v156
    %v158 = vand.u32 %v59, 4294901760
    %v159 = vsub.f32 %v59, %v158
    %v160 = vand.u32 %v159, 4294901760
    %v161 = vsub.f32 %v159, %v160
    %v162 = vand.u32 %v161, 4294901760
    %163 = vmatpush.msra.mxu0 %v162
    %v164 = vand.u32 %v58, 4294901760
    %v165 = vsub.f32 %v58, %v164
    %v166 = vand.u32 %v165, 4294901760
    %v167 = vsub.f32 %v165, %v166
    %v168 = vand.u32 %v167, 4294901760
    %169 = vmatpush.msra.mxu0 %v168
    %v170 = vand.u32 %v57, 4294901760
    %v171 = vsub.f32 %v57, %v170
    %v172 = vand.u32 %v171, 4294901760
    %v173 = vsub.f32 %v171, %v172
    %v174 = vand.u32 %v173, 4294901760
    %175 = vmatpush.msra.mxu0 %v174
    %v176 = vand.u32 %v56, 4294901760
    %v177 = vsub.f32 %v56, %v176
    %v178 = vand.u32 %v177, 4294901760
    %v179 = vsub.f32 %v177, %v178
    %v180 = vand.u32 %v179, 4294901760
    %181 = vmatpush.msra.mxu0 %v180
    %v182 = vand.u32 %v55, 4294901760
    %v183 = vsub.f32 %v55, %v182
    %v184 = vand.u32 %v183, 4294901760
    %v185 = vsub.f32 %v183, %v184
    %v186 = vand.u32 %v185, 4294901760
    %187 = vmatpush.msra.mxu0 %v186
    %v188 = vand.u32 %v54, 4294901760
    %v189 = vsub.f32 %v54, %v188
    %v190 = vand.u32 %v189, 4294901760
    %v191 = vsub.f32 %v189, %v190
    %v192 = vand.u32 %v191, 4294901760
    %193 = vmatpush.msra.mxu0 %v192
    %v194 = vand.u32 %v53, 4294901760
    %v195 = vsub.f32 %v53, %v194
    %v196 = vand.u32 %v195, 4294901760
    %v197 = vsub.f32 %v195, %v196
    %v198 = vand.u32 %v197, 4294901760
    %199 = vmatpush.msra.mxu0 %v198
    %v200 = vand.u32 %v52, 4294901760
    %v201 = vsub.f32 %v52, %v200
    %v202 = vand.u32 %v201, 4294901760
    %v203 = vsub.f32 %v201, %v202
    %v204 = vand.u32 %v203, 4294901760
    %205 = vmatpush.msra.mxu0 %v204
    %v206 = vand.u32 %v51, 4294901760
    %v207 = vsub.f32 %v51, %v206
    %v208 = vand.u32 %v207, 4294901760
    %v209 = vsub.f32 %v207, %v208
    %v210 = vand.u32 %v209, 4294901760
    %211 = vmatpush.msra.mxu0 %v210
    %v212 = vand.u32 %v50, 4294901760
    %v213 = vsub.f32 %v50, %v212
    %v214 = vand.u32 %v213, 4294901760
    %v215 = vsub.f32 %v213, %v214
    %v216 = vand.u32 %v215, 4294901760
    %217 = vmatpush.msra.mxu0 %v216
    %v218 = vand.u32 %v49, 4294901760
    %v219 = vsub.f32 %v49, %v218
    %v220 = vand.u32 %v219, 4294901760
    %v221 = vsub.f32 %v219, %v220
    %v222 = vand.u32 %v221, 4294901760
    %223 = vmatpush.msra.mxu0 %v222
    %v224 = vand.u32 %v48, 4294901760
    %v225 = vsub.f32 %v48, %v224
    %v226 = vand.u32 %v225, 4294901760
    %v227 = vsub.f32 %v225, %v226
    %v228 = vand.u32 %v227, 4294901760
    %229 = vmatpush.msra.mxu0 %v228
    %v230 = vand.u32 %v47, 4294901760
    %v231 = vsub.f32 %v47, %v230
    %v232 = vand.u32 %v231, 4294901760
    %v233 = vsub.f32 %v231, %v232
    %v234 = vand.u32 %v233, 4294901760
    %235 = vmatpush.msra.mxu0 %v234
    %v236 = vand.u32 %v43, 4294901760
    %237 = vmatmul.f32.gmra.mxu0 %v236
    %v238 = vpop.f32.mrf.mxu0
    %v239 = vadd.f32 %v130, %v238
    %v240 = vand.u32 %v45, 4294901760
    %241 = vmatmul.f32.gmra.mxu0 %v240
    %v242 = vpop.f32.mrf.mxu0
    %v243 = vadd.f32 %v138, %v242
    %244 = vdwg.mxu0
    %v245 = vand.u32 %v62, 4294901760
    %v246 = vsub.f32 %v62, %v245
    %247 = vmatpush.msra.mxu0 %v246
    %v248 = vand.u32 %v61, 4294901760
    %v249 = vsub.f32 %v61, %v248
    %250 = vmatpush.msra.mxu0 %v249
    %v251 = vand.u32 %v60, 4294901760
    %v252 = vsub.f32 %v60, %v251
    %253 = vmatpush.msra.mxu0 %v252
    %v254 = vand.u32 %v59, 4294901760
    %v255 = vsub.f32 %v59, %v254
    %256 = vmatpush.msra.mxu0 %v255
    %v257 = vand.u32 %v58, 4294901760
    %v258 = vsub.f32 %v58, %v257
    %259 = vmatpush.msra.mxu0 %v258
    %v260 = vand.u32 %v57, 4294901760
    %v261 = vsub.f32 %v57, %v260
    %262 = vmatpush.msra.mxu0 %v261
    %v263 = vand.u32 %v56, 4294901760
    %v264 = vsub.f32 %v56, %v263
    %265 = vmatpush.msra.mxu0 %v264
    %v266 = vand.u32 %v55, 4294901760
    %v267 = vsub.f32 %v55, %v266
    %268 = vmatpush.msra.mxu0 %v267
    %v269 = vand.u32 %v54, 4294901760
    %v270 = vsub.f32 %v54, %v269
    %271 = vmatpush.msra.mxu0 %v270
    %v272 = vand.u32 %v53, 4294901760
    %v273 = vsub.f32 %v53, %v272
    %274 = vmatpush.msra.mxu0 %v273
    %v275 = vand.u32 %v52, 4294901760
    %v276 = vsub.f32 %v52, %v275
    %277 = vmatpush.msra.mxu0 %v276
    %v278 = vand.u32 %v51, 4294901760
    %v279 = vsub.f32 %v51, %v278
    %280 = vmatpush.msra.mxu0 %v279
    %v281 = vand.u32 %v50, 4294901760
    %v282 = vsub.f32 %v50, %v281
    %283 = vmatpush.msra.mxu0 %v282
    %v284 = vand.u32 %v49, 4294901760
    %v285 = vsub.f32 %v49, %v284
    %286 = vmatpush.msra.mxu0 %v285
    %v287 = vand.u32 %v48, 4294901760
    %v288 = vsub.f32 %v48, %v287
    %289 = vmatpush.msra.mxu0 %v288
    %v290 = vand.u32 %v47, 4294901760
    %v291 = vsub.f32 %v47, %v290
    %292 = vmatpush.msra.mxu0 %v291
    %v293 = vand.u32 %v43, 4294901760
    %v294 = vsub.f32 %v43, %v293
    %295 = vmatmul.f32.gmra.mxu0 %v294
    %v296 = vpop.f32.mrf.mxu0
    %v297 = vadd.f32 %v239, %v296
    %v298 = vand.u32 %v45, 4294901760
    %v299 = vsub.f32 %v45, %v298
    %300 = vmatmul.f32.gmra.mxu0 %v299
    %v301 = vpop.f32.mrf.mxu0
    %v302 = vadd.f32 %v243, %v301
    %303 = vdwg.mxu0
    %v304 = vand.u32 %v62, 4294901760
    %305 = vmatpush.msra.mxu0 %v304
    %v306 = vand.u32 %v61, 4294901760
    %307 = vmatpush.msra.mxu0 %v306
    %v308 = vand.u32 %v60, 4294901760
    %309 = vmatpush.msra.mxu0 %v308
    %v310 = vand.u32 %v59, 4294901760
    %311 = vmatpush.msra.mxu0 %v310
    %v312 = vand.u32 %v58, 4294901760
    %313 = vmatpush.msra.mxu0 %v312
    %v314 = vand.u32 %v57, 4294901760
    %315 = vmatpush.msra.mxu0 %v314
    %v316 = vand.u32 %v56, 4294901760
    %317 = vmatpush.msra.mxu0 %v316
    %v318 = vand.u32 %v55, 4294901760
    %319 = vmatpush.msra.mxu0 %v318
    %v320 = vand.u32 %v54, 4294901760
    %321 = vmatpush.msra.mxu0 %v320
    %v322 = vand.u32 %v53, 4294901760
    %323 = vmatpush.msra.mxu0 %v322
    %v324 = vand.u32 %v52, 4294901760
    %325 = vmatpush.msra.mxu0 %v324
    %v326 = vand.u32 %v51, 4294901760
    %327 = vmatpush.msra.mxu0 %v326
    %v328 = vand.u32 %v50, 4294901760
    %329 = vmatpush.msra.mxu0 %v328
    %v330 = vand.u32 %v49, 4294901760
    %331 = vmatpush.msra.mxu0 %v330
    %v332 = vand.u32 %v48, 4294901760
    %333 = vmatpush.msra.mxu0 %v332
    %v334 = vand.u32 %v47, 4294901760
    %335 = vmatpush.msra.mxu0 %v334
    %v336 = vand.u32 %v43, 4294901760
    %v337 = vsub.f32 %v43, %v336
    %v338 = vand.u32 %v337, 4294901760
    %339 = vmatmul.f32.gmra.mxu0 %v338
    %v340 = vpop.f32.mrf.mxu0
    %v341 = vadd.f32 %v297, %v340
    %v342 = vand.u32 %v45, 4294901760
    %v343 = vsub.f32 %v45, %v342
    %v344 = vand.u32 %v343, 4294901760
    %345 = vmatmul.f32.gmra.mxu0 %v344
    %v346 = vpop.f32.mrf.mxu0
    %v347 = vadd.f32 %v302, %v346
    %348 = vdwg.mxu0
    %v349 = vand.u32 %v62, 4294901760
    %v350 = vsub.f32 %v62, %v349
    %v351 = vand.u32 %v350, 4294901760
    %352 = vmatpush.msra.mxu0 %v351
    %v353 = vand.u32 %v61, 4294901760
    %v354 = vsub.f32 %v61, %v353
    %v355 = vand.u32 %v354, 4294901760
    %356 = vmatpush.msra.mxu0 %v355
    %v357 = vand.u32 %v60, 4294901760
    %v358 = vsub.f32 %v60, %v357
    %v359 = vand.u32 %v358, 4294901760
    %360 = vmatpush.msra.mxu0 %v359
    %v361 = vand.u32 %v59, 4294901760
    %v362 = vsub.f32 %v59, %v361
    %v363 = vand.u32 %v362, 4294901760
    %364 = vmatpush.msra.mxu0 %v363
    %v365 = vand.u32 %v58, 4294901760
    %v366 = vsub.f32 %v58, %v365
    %v367 = vand.u32 %v366, 4294901760
    %368 = vmatpush.msra.mxu0 %v367
    %v369 = vand.u32 %v57, 4294901760
    %v370 = vsub.f32 %v57, %v369
    %v371 = vand.u32 %v370, 4294901760
    %372 = vmatpush.msra.mxu0 %v371
    %v373 = vand.u32 %v56, 4294901760
    %v374 = vsub.f32 %v56, %v373
    %v375 = vand.u32 %v374, 4294901760
    %376 = vmatpush.msra.mxu0 %v375
    %v377 = vand.u32 %v55, 4294901760
    %v378 = vsub.f32 %v55, %v377
    %v379 = vand.u32 %v378, 4294901760
    %380 = vmatpush.msra.mxu0 %v379
    %v381 = vand.u32 %v54, 4294901760
    %v382 = vsub.f32 %v54, %v381
    %v383 = vand.u32 %v382, 4294901760
    %384 = vmatpush.msra.mxu0 %v383
    %v385 = vand.u32 %v53, 4294901760
    %v386 = vsub.f32 %v53, %v385
    %v387 = vand.u32 %v386, 4294901760
    %388 = vmatpush.msra.mxu0 %v387
    %v389 = vand.u32 %v52, 4294901760
    %v390 = vsub.f32 %v52, %v389
    %v391 = vand.u32 %v390, 4294901760
    %392 = vmatpush.msra.mxu0 %v391
    %v393 = vand.u32 %v51, 4294901760
    %v394 = vsub.f32 %v51, %v393
    %v395 = vand.u32 %v394, 4294901760
    %396 = vmatpush.msra.mxu0 %v395
    %v397 = vand.u32 %v50, 4294901760
    %v398 = vsub.f32 %v50, %v397
    %v399 = vand.u32 %v398, 4294901760
    %400 = vmatpush.msra.mxu0 %v399
    %v401 = vand.u32 %v49, 4294901760
    %v402 = vsub.f32 %v49, %v401
    %v403 = vand.u32 %v402, 4294901760
    %404 = vmatpush.msra.mxu0 %v403
    %v405 = vand.u32 %v48, 4294901760
    %v406 = vsub.f32 %v48, %v405
    %v407 = vand.u32 %v406, 4294901760
    %408 = vmatpush.msra.mxu0 %v407
    %v409 = vand.u32 %v47, 4294901760
    %v410 = vsub.f32 %v47, %v409
    %v411 = vand.u32 %v410, 4294901760
    %412 = vmatpush.msra.mxu0 %v411
    %v413 = vand.u32 %v43, 4294901760
    %414 = vmatmul.f32.gmra.mxu0 %v413
    %v415 = vpop.f32.mrf.mxu0
    %v416 = vadd.f32 %v341, %v415
    %v417 = vand.u32 %v45, 4294901760
    %418 = vmatmul.f32.gmra.mxu0 %v417
    %v419 = vpop.f32.mrf.mxu0
    %v420 = vadd.f32 %v347, %v419
    %421 = vdwg.mxu0
    %v422 = vand.u32 %v62, 4294901760
    %423 = vmatpush.msra.mxu0 %v422
    %v424 = vand.u32 %v61, 4294901760
    %425 = vmatpush.msra.mxu0 %v424
    %v426 = vand.u32 %v60, 4294901760
    %427 = vmatpush.msra.mxu0 %v426
    %v428 = vand.u32 %v59, 4294901760
    %429 = vmatpush.msra.mxu0 %v428
    %v430 = vand.u32 %v58, 4294901760
    %431 = vmatpush.msra.mxu0 %v430
    %v432 = vand.u32 %v57, 4294901760
    %433 = vmatpush.msra.mxu0 %v432
    %v434 = vand.u32 %v56, 4294901760
    %435 = vmatpush.msra.mxu0 %v434
    %v436 = vand.u32 %v55, 4294901760
    %437 = vmatpush.msra.mxu0 %v436
    %v438 = vand.u32 %v54, 4294901760
    %439 = vmatpush.msra.mxu0 %v438
    %v440 = vand.u32 %v53, 4294901760
    %441 = vmatpush.msra.mxu0 %v440
    %v442 = vand.u32 %v52, 4294901760
    %443 = vmatpush.msra.mxu0 %v442
    %v444 = vand.u32 %v51, 4294901760
    %445 = vmatpush.msra.mxu0 %v444
    %v446 = vand.u32 %v50, 4294901760
    %447 = vmatpush.msra.mxu0 %v446
    %v448 = vand.u32 %v49, 4294901760
    %449 = vmatpush.msra.mxu0 %v448
    %v450 = vand.u32 %v48, 4294901760
    %451 = vmatpush.msra.mxu0 %v450
    %v452 = vand.u32 %v47, 4294901760
    %453 = vmatpush.msra.mxu0 %v452
    %v454 = vand.u32 %v43, 4294901760
    %455 = vmatmul.f32.gmra.mxu0 %v454
    %v456 = vpop.f32.mrf.mxu0
    %v457 = vadd.f32 %v416, %v456
    %v458 = vand.u32 %v45, 4294901760
    %459 = vmatmul.f32.gmra.mxu0 %v458
    %v460 = vpop.f32.mrf.mxu0
    %v461 = vadd.f32 %v420, %v460
    %462 = vdwg.mxu0
    %v463 = vand.u32 %v78, 4294901760
    %464 = vmatpush.msra.mxu0 %v463
    %v465 = vand.u32 %v77, 4294901760
    %466 = vmatpush.msra.mxu0 %v465
    %v467 = vand.u32 %v76, 4294901760
    %468 = vmatpush.msra.mxu0 %v467
    %v469 = vand.u32 %v75, 4294901760
    %470 = vmatpush.msra.mxu0 %v469
    %v471 = vand.u32 %v74, 4294901760
    %472 = vmatpush.msra.mxu0 %v471
    %v473 = vand.u32 %v73, 4294901760
    %474 = vmatpush.msra.mxu0 %v473
    %v475 = vand.u32 %v72, 4294901760
    %476 = vmatpush.msra.mxu0 %v475
    %v477 = vand.u32 %v71, 4294901760
    %478 = vmatpush.msra.mxu0 %v477
    %v479 = vand.u32 %v70, 4294901760
    %480 = vmatpush.msra.mxu0 %v479
    %v481 = vand.u32 %v69, 4294901760
    %482 = vmatpush.msra.mxu0 %v481
    %v483 = vand.u32 %v68, 4294901760
    %484 = vmatpush.msra.mxu0 %v483
    %v485 = vand.u32 %v67, 4294901760
    %486 = vmatpush.msra.mxu0 %v485
    %v487 = vand.u32 %v66, 4294901760
    %488 = vmatpush.msra.mxu0 %v487
    %v489 = vand.u32 %v65, 4294901760
    %490 = vmatpush.msra.mxu0 %v489
    %v491 = vand.u32 %v64, 4294901760
    %492 = vmatpush.msra.mxu0 %v491
    %v493 = vand.u32 %v63, 4294901760
    %494 = vmatpush.msra.mxu0 %v493
    %v495 = vand.u32 %v44, 4294901760
    %v496 = vsub.f32 %v44, %v495
    %v497 = vand.u32 %v496, 4294901760
    %v498 = vsub.f32 %v496, %v497
    %v499 = vand.u32 %v498, 4294901760
    %500 = vmatmul.f32.gmra.mxu0 %v499
    %v501 = vpop.f32.mrf.mxu0
    %v502 = vadd.f32 %v457, %v501
    %v503 = vand.u32 %v46, 4294901760
    %v504 = vsub.f32 %v46, %v503
    %v505 = vand.u32 %v504, 4294901760
    %v506 = vsub.f32 %v504, %v505
    %v507 = vand.u32 %v506, 4294901760
    %508 = vmatmul.f32.gmra.mxu0 %v507
    %v509 = vpop.f32.mrf.mxu0
    %v510 = vadd.f32 %v461, %v509
    %511 = vdwg.mxu0
    %v512 = vand.u32 %v78, 4294901760
    %v513 = vsub.f32 %v78, %v512
    %v514 = vand.u32 %v513, 4294901760
    %v515 = vsub.f32 %v513, %v514
    %v516 = vand.u32 %v515, 4294901760
    %517 = vmatpush.msra.mxu0 %v516
    %v518 = vand.u32 %v77, 4294901760
    %v519 = vsub.f32 %v77, %v518
    %v520 = vand.u32 %v519, 4294901760
    %v521 = vsub.f32 %v519, %v520
    %v522 = vand.u32 %v521, 4294901760
    %523 = vmatpush.msra.mxu0 %v522
    %v524 = vand.u32 %v76, 4294901760
    %v525 = vsub.f32 %v76, %v524
    %v526 = vand.u32 %v525, 4294901760
    %v527 = vsub.f32 %v525, %v526
    %v528 = vand.u32 %v527, 4294901760
    %529 = vmatpush.msra.mxu0 %v528
    %v530 = vand.u32 %v75, 4294901760
    %v531 = vsub.f32 %v75, %v530
    %v532 = vand.u32 %v531, 4294901760
    %v533 = vsub.f32 %v531, %v532
    %v534 = vand.u32 %v533, 4294901760
    %535 = vmatpush.msra.mxu0 %v534
    %v536 = vand.u32 %v74, 4294901760
    %v537 = vsub.f32 %v74, %v536
    %v538 = vand.u32 %v537, 4294901760
    %v539 = vsub.f32 %v537, %v538
    %v540 = vand.u32 %v539, 4294901760
    %541 = vmatpush.msra.mxu0 %v540
    %v542 = vand.u32 %v73, 4294901760
    %v543 = vsub.f32 %v73, %v542
    %v544 = vand.u32 %v543, 4294901760
    %v545 = vsub.f32 %v543, %v544
    %v546 = vand.u32 %v545, 4294901760
    %547 = vmatpush.msra.mxu0 %v546
    %v548 = vand.u32 %v72, 4294901760
    %v549 = vsub.f32 %v72, %v548
    %v550 = vand.u32 %v549, 4294901760
    %v551 = vsub.f32 %v549, %v550
    %v552 = vand.u32 %v551, 4294901760
    %553 = vmatpush.msra.mxu0 %v552
    %v554 = vand.u32 %v71, 4294901760
    %v555 = vsub.f32 %v71, %v554
    %v556 = vand.u32 %v555, 4294901760
    %v557 = vsub.f32 %v555, %v556
    %v558 = vand.u32 %v557, 4294901760
    %559 = vmatpush.msra.mxu0 %v558
    %v560 = vand.u32 %v70, 4294901760
    %v561 = vsub.f32 %v70, %v560
    %v562 = vand.u32 %v561, 4294901760
    %v563 = vsub.f32 %v561, %v562
    %v564 = vand.u32 %v563, 4294901760
    %565 = vmatpush.msra.mxu0 %v564
    %v566 = vand.u32 %v69, 4294901760
    %v567 = vsub.f32 %v69, %v566
    %v568 = vand.u32 %v567, 4294901760
    %v569 = vsub.f32 %v567, %v568
    %v570 = vand.u32 %v569, 4294901760
    %571 = vmatpush.msra.mxu0 %v570
    %v572 = vand.u32 %v68, 4294901760
    %v573 = vsub.f32 %v68, %v572
    %v574 = vand.u32 %v573, 4294901760
    %v575 = vsub.f32 %v573, %v574
    %v576 = vand.u32 %v575, 4294901760
    %577 = vmatpush.msra.mxu0 %v576
    %v578 = vand.u32 %v67, 4294901760
    %v579 = vsub.f32 %v67, %v578
    %v580 = vand.u32 %v579, 4294901760
    %v581 = vsub.f32 %v579, %v580
    %v582 = vand.u32 %v581, 4294901760
    %583 = vmatpush.msra.mxu0 %v582
    %v584 = vand.u32 %v66, 4294901760
    %v585 = vsub.f32 %v66, %v584
    %v586 = vand.u32 %v585, 4294901760
    %v587 = vsub.f32 %v585, %v586
    %v588 = vand.u32 %v587, 4294901760
    %589 = vmatpush.msra.mxu0 %v588
    %v590 = vand.u32 %v65, 4294901760
    %v591 = vsub.f32 %v65, %v590
    %v592 = vand.u32 %v591, 4294901760
    %v593 = vsub.f32 %v591, %v592
    %v594 = vand.u32 %v593, 4294901760
    %595 = vmatpush.msra.mxu0 %v594
    %v596 = vand.u32 %v64, 4294901760
    %v597 = vsub.f32 %v64, %v596
    %v598 = vand.u32 %v597, 4294901760
    %v599 = vsub.f32 %v597, %v598
    %v600 = vand.u32 %v599, 4294901760
    %601 = vmatpush.msra.mxu0 %v600
    %v602 = vand.u32 %v63, 4294901760
    %v603 = vsub.f32 %v63, %v602
    %v604 = vand.u32 %v603, 4294901760
    %v605 = vsub.f32 %v603, %v604
    %v606 = vand.u32 %v605, 4294901760
    %607 = vmatpush.msra.mxu0 %v606
    %v608 = vand.u32 %v44, 4294901760
    %609 = vmatmul.f32.gmra.mxu0 %v608
    %v610 = vpop.f32.mrf.mxu0
    %v611 = vadd.f32 %v502, %v610
    %v612 = vand.u32 %v46, 4294901760
    %613 = vmatmul.f32.gmra.mxu0 %v612
    %v614 = vpop.f32.mrf.mxu0
    %v615 = vadd.f32 %v510, %v614
    %616 = vdwg.mxu0
    %v617 = vand.u32 %v78, 4294901760
    %v618 = vsub.f32 %v78, %v617
    %619 = vmatpush.msra.mxu0 %v618
    %v620 = vand.u32 %v77, 4294901760
    %v621 = vsub.f32 %v77, %v620
    %622 = vmatpush.msra.mxu0 %v621
    %v623 = vand.u32 %v76, 4294901760
    %v624 = vsub.f32 %v76, %v623
    %625 = vmatpush.msra.mxu0 %v624
    %v626 = vand.u32 %v75, 4294901760
    %v627 = vsub.f32 %v75, %v626
    %628 = vmatpush.msra.mxu0 %v627
    %v629 = vand.u32 %v74, 4294901760
    %v630 = vsub.f32 %v74, %v629
    %631 = vmatpush.msra.mxu0 %v630
    %v632 = vand.u32 %v73, 4294901760
    %v633 = vsub.f32 %v73, %v632
    %634 = vmatpush.msra.mxu0 %v633
    %v635 = vand.u32 %v72, 4294901760
    %v636 = vsub.f32 %v72, %v635
    %637 = vmatpush.msra.mxu0 %v636
    %v638 = vand.u32 %v71, 4294901760
    %v639 = vsub.f32 %v71, %v638
    %640 = vmatpush.msra.mxu0 %v639
    %v641 = vand.u32 %v70, 4294901760
    %v642 = vsub.f32 %v70, %v641
    %643 = vmatpush.msra.mxu0 %v642
    %v644 = vand.u32 %v69, 4294901760
    %v645 = vsub.f32 %v69, %v644
    %646 = vmatpush.msra.mxu0 %v645
    %v647 = vand.u32 %v68, 4294901760
    %v648 = vsub.f32 %v68, %v647
    %649 = vmatpush.msra.mxu0 %v648
    %v650 = vand.u32 %v67, 4294901760
    %v651 = vsub.f32 %v67, %v650
    %652 = vmatpush.msra.mxu0 %v651
    %v653 = vand.u32 %v66, 4294901760
    %v654 = vsub.f32 %v66, %v653
    %655 = vmatpush.msra.mxu0 %v654
    %v656 = vand.u32 %v65, 4294901760
    %v657 = vsub.f32 %v65, %v656
    %658 = vmatpush.msra.mxu0 %v657
    %v659 = vand.u32 %v64, 4294901760
    %v660 = vsub.f32 %v64, %v659
    %661 = vmatpush.msra.mxu0 %v660
    %v662 = vand.u32 %v63, 4294901760
    %v663 = vsub.f32 %v63, %v662
    %664 = vmatpush.msra.mxu0 %v663
    %v665 = vand.u32 %v44, 4294901760
    %v666 = vsub.f32 %v44, %v665
    %667 = vmatmul.f32.gmra.mxu0 %v666
    %v668 = vpop.f32.mrf.mxu0
    %v669 = vadd.f32 %v611, %v668
    %v670 = vand.u32 %v46, 4294901760
    %v671 = vsub.f32 %v46, %v670
    %672 = vmatmul.f32.gmra.mxu0 %v671
    %v673 = vpop.f32.mrf.mxu0
    %v674 = vadd.f32 %v615, %v673
    %675 = vdwg.mxu0
    %v676 = vand.u32 %v78, 4294901760
    %677 = vmatpush.msra.mxu0 %v676
    %v678 = vand.u32 %v77, 4294901760
    %679 = vmatpush.msra.mxu0 %v678
    %v680 = vand.u32 %v76, 4294901760
    %681 = vmatpush.msra.mxu0 %v680
    %v682 = vand.u32 %v75, 4294901760
    %683 = vmatpush.msra.mxu0 %v682
    %v684 = vand.u32 %v74, 4294901760
    %685 = vmatpush.msra.mxu0 %v684
    %v686 = vand.u32 %v73, 4294901760
    %687 = vmatpush.msra.mxu0 %v686
    %v688 = vand.u32 %v72, 4294901760
    %689 = vmatpush.msra.mxu0 %v688
    %v690 = vand.u32 %v71, 4294901760
    %691 = vmatpush.msra.mxu0 %v690
    %v692 = vand.u32 %v70, 4294901760
    %693 = vmatpush.msra.mxu0 %v692
    %v694 = vand.u32 %v69, 4294901760
    %695 = vmatpush.msra.mxu0 %v694
    %v696 = vand.u32 %v68, 4294901760
    %697 = vmatpush.msra.mxu0 %v696
    %v698 = vand.u32 %v67, 4294901760
    %699 = vmatpush.msra.mxu0 %v698
    %v700 = vand.u32 %v66, 4294901760
    %701 = vmatpush.msra.mxu0 %v700
    %v702 = vand.u32 %v65, 4294901760
    %703 = vmatpush.msra.mxu0 %v702
    %v704 = vand.u32 %v64, 4294901760
    %705 = vmatpush.msra.mxu0 %v704
    %v706 = vand.u32 %v63, 4294901760
    %707 = vmatpush.msra.mxu0 %v706
    %v708 = vand.u32 %v44, 4294901760
    %v709 = vsub.f32 %v44, %v708
    %v710 = vand.u32 %v709, 4294901760
    %711 = vmatmul.f32.gmra.mxu0 %v710
    %v712 = vpop.f32.mrf.mxu0
    %v713 = vadd.f32 %v669, %v712
    %v714 = vand.u32 %v46, 4294901760
    %v715 = vsub.f32 %v46, %v714
    %v716 = vand.u32 %v715, 4294901760
    %717 = vmatmul.f32.gmra.mxu0 %v716
    %v718 = vpop.f32.mrf.mxu0
    %v719 = vadd.f32 %v674, %v718
    %720 = vdwg.mxu0
    %v721 = vand.u32 %v78, 4294901760
    %v722 = vsub.f32 %v78, %v721
    %v723 = vand.u32 %v722, 4294901760
    %724 = vmatpush.msra.mxu0 %v723
    %v725 = vand.u32 %v77, 4294901760
    %v726 = vsub.f32 %v77, %v725
    %v727 = vand.u32 %v726, 4294901760
    %728 = vmatpush.msra.mxu0 %v727
    %v729 = vand.u32 %v76, 4294901760
    %v730 = vsub.f32 %v76, %v729
    %v731 = vand.u32 %v730, 4294901760
    %732 = vmatpush.msra.mxu0 %v731
    %v733 = vand.u32 %v75, 4294901760
    %v734 = vsub.f32 %v75, %v733
    %v735 = vand.u32 %v734, 4294901760
    %736 = vmatpush.msra.mxu0 %v735
    %v737 = vand.u32 %v74, 4294901760
    %v738 = vsub.f32 %v74, %v737
    %v739 = vand.u32 %v738, 4294901760
    %740 = vmatpush.msra.mxu0 %v739
    %v741 = vand.u32 %v73, 4294901760
    %v742 = vsub.f32 %v73, %v741
    %v743 = vand.u32 %v742, 4294901760
    %744 = vmatpush.msra.mxu0 %v743
    %v745 = vand.u32 %v72, 4294901760
    %v746 = vsub.f32 %v72, %v745
    %v747 = vand.u32 %v746, 4294901760
    %748 = vmatpush.msra.mxu0 %v747
    %v749 = vand.u32 %v71, 4294901760
    %v750 = vsub.f32 %v71, %v749
    %v751 = vand.u32 %v750, 4294901760
    %752 = vmatpush.msra.mxu0 %v751
    %v753 = vand.u32 %v70, 4294901760
    %v754 = vsub.f32 %v70, %v753
    %v755 = vand.u32 %v754, 4294901760
    %756 = vmatpush.msra.mxu0 %v755
    %v757 = vand.u32 %v69, 4294901760
    %v758 = vsub.f32 %v69, %v757
    %v759 = vand.u32 %v758, 4294901760
    %760 = vmatpush.msra.mxu0 %v759
    %v761 = vand.u32 %v68, 4294901760
    %v762 = vsub.f32 %v68, %v761
    %v763 = vand.u32 %v762, 4294901760
    %764 = vmatpush.msra.mxu0 %v763
    %v765 = vand.u32 %v67, 4294901760
    %v766 = vsub.f32 %v67, %v765
    %v767 = vand.u32 %v766, 4294901760
    %768 = vmatpush.msra.mxu0 %v767
    %v769 = vand.u32 %v66, 4294901760
    %v770 = vsub.f32 %v66, %v769
    %v771 = vand.u32 %v770, 4294901760
    %772 = vmatpush.msra.mxu0 %v771
    %v773 = vand.u32 %v65, 4294901760
    %v774 = vsub.f32 %v65, %v773
    %v775 = vand.u32 %v774, 4294901760
    %776 = vmatpush.msra.mxu0 %v775
    %v777 = vand.u32 %v64, 4294901760
    %v778 = vsub.f32 %v64, %v777
    %v779 = vand.u32 %v778, 4294901760
    %780 = vmatpush.msra.mxu0 %v779
    %v781 = vand.u32 %v63, 4294901760
    %v782 = vsub.f32 %v63, %v781
    %v783 = vand.u32 %v782, 4294901760
    %784 = vmatpush.msra.mxu0 %v783
    %v785 = vand.u32 %v44, 4294901760
    %786 = vmatmul.f32.gmra.mxu0 %v785
    %v787 = vpop.f32.mrf.mxu0
    %v788 = vadd.f32 %v713, %v787
    %v789 = vand.u32 %v46, 4294901760
    %790 = vmatmul.f32.gmra.mxu0 %v789
    %v791 = vpop.f32.mrf.mxu0
    %v792 = vadd.f32 %v719, %v791
    %793 = vdwg.mxu0
    %v794 = vand.u32 %v78, 4294901760
    %795 = vmatpush.msra.mxu0 %v794
    %v796 = vand.u32 %v77, 4294901760
    %797 = vmatpush.msra.mxu0 %v796
    %v798 = vand.u32 %v76, 4294901760
    %799 = vmatpush.msra.mxu0 %v798
    %v800 = vand.u32 %v75, 4294901760
    %801 = vmatpush.msra.mxu0 %v800
    %v802 = vand.u32 %v74, 4294901760
    %803 = vmatpush.msra.mxu0 %v802
    %v804 = vand.u32 %v73, 4294901760
    %805 = vmatpush.msra.mxu0 %v804
    %v806 = vand.u32 %v72, 4294901760
    %807 = vmatpush.msra.mxu0 %v806
    %v808 = vand.u32 %v71, 4294901760
    %809 = vmatpush.msra.mxu0 %v808
    %v810 = vand.u32 %v70, 4294901760
    %811 = vmatpush.msra.mxu0 %v810
    %v812 = vand.u32 %v69, 4294901760
    %813 = vmatpush.msra.mxu0 %v812
    %v814 = vand.u32 %v68, 4294901760
    %815 = vmatpush.msra.mxu0 %v814
    %v816 = vand.u32 %v67, 4294901760
    %817 = vmatpush.msra.mxu0 %v816
    %v818 = vand.u32 %v66, 4294901760
    %819 = vmatpush.msra.mxu0 %v818
    %v820 = vand.u32 %v65, 4294901760
    %821 = vmatpush.msra.mxu0 %v820
    %v822 = vand.u32 %v64, 4294901760
    %823 = vmatpush.msra.mxu0 %v822
    %v824 = vand.u32 %v63, 4294901760
    %825 = vmatpush.msra.mxu0 %v824
    %v826 = vand.u32 %v44, 4294901760
    %827 = vmatmul.f32.gmra.mxu0 %v826
    %v828 = vpop.f32.mrf.mxu0
    %v829 = vadd.f32 %v788, %v828
    %v830 = vand.u32 %v46, 4294901760
    %831 = vmatmul.f32.gmra.mxu0 %v830
    %v832 = vpop.f32.mrf.mxu0
    %v833 = vadd.f32 %v792, %v832
    %834 = vdwg.mxu0
    %837 = vrot.lane.b32.xlu0 %v829, 96
    %v838 = vpop.permute.xlu0 %837
    %839 = vrot.lane.b32.xlu0 %v833, 96
    %v840 = vpop.permute.xlu0 %839
    %843 = vrot.lane.b32.xlu0 %v829, 64
    %v844 = vpop.permute.xlu0 %843
    %845 = vrot.lane.b32.xlu0 %v833, 64
    %v846 = vpop.permute.xlu0 %845
    %850 = vset.pattern.permute.xlu0 0
    %851 = vperm.xlu0 %850, %v90
    %v852 = vpop.permute.xlu0 %851
    %vm854 = vcmask 195584
    %v856 = vsel %vm854, %v87, 0
    %858 = vmatpush.msra.mxu0 0.0
    %859 = vmatpush.msra.mxu0 0.0
    %860 = vmatpush.msra.mxu0 0.0
    %861 = vmatpush.msra.mxu0 0.0
    %862 = vmatpush.msra.mxu0 0.0
    %863 = vmatpush.msra.mxu0 0.0
    %864 = vmatpush.msra.mxu0 0.0
    %865 = vmatpush.msra.mxu0 0.0
    %866 = vmatpush.msra.mxu0 0.0
    %867 = vmatpush.msra.mxu0 0.0
    %868 = vmatpush.msra.mxu0 0.0
    %869 = vmatpush.msra.mxu0 0.0
    %870 = vmatpush.msra.mxu0 0.0
    %v871 = vand.u32 %v844, 4294901760
    %872 = vmatpush.msra.mxu0 %v871
    %v873 = vand.u32 %v838, 4294901760
    %874 = vmatpush.msra.mxu0 %v873
    %v875 = vand.u32 %v829, 4294901760
    %876 = vmatpush.msra.mxu0 %v875
    %v877 = vand.u32 %v856, 4294901760
    %v878 = vsub.f32 %v856, %v877
    %v879 = vand.u32 %v878, 4294901760
    %v880 = vsub.f32 %v878, %v879
    %v881 = vand.u32 %v880, 4294901760
    %882 = vmatmul.f32.gmra.mxu0 %v881
    %v883 = vpop.f32.mrf.mxu0
    %v884 = vadd.f32 %v852, %v883
    %885 = vdwg.mxu0
    %886 = vmatpush.msra.mxu0 0.0
    %887 = vmatpush.msra.mxu0 0.0
    %888 = vmatpush.msra.mxu0 0.0
    %889 = vmatpush.msra.mxu0 0.0
    %890 = vmatpush.msra.mxu0 0.0
    %891 = vmatpush.msra.mxu0 0.0
    %892 = vmatpush.msra.mxu0 0.0
    %893 = vmatpush.msra.mxu0 0.0
    %894 = vmatpush.msra.mxu0 0.0
    %895 = vmatpush.msra.mxu0 0.0
    %896 = vmatpush.msra.mxu0 0.0
    %897 = vmatpush.msra.mxu0 0.0
    %898 = vmatpush.msra.mxu0 0.0
    %v899 = vand.u32 %v844, 4294901760
    %v900 = vsub.f32 %v844, %v899
    %v901 = vand.u32 %v900, 4294901760
    %v902 = vsub.f32 %v900, %v901
    %v903 = vand.u32 %v902, 4294901760
    %904 = vmatpush.msra.mxu0 %v903
    %v905 = vand.u32 %v838, 4294901760
    %v906 = vsub.f32 %v838, %v905
    %v907 = vand.u32 %v906, 4294901760
    %v908 = vsub.f32 %v906, %v907
    %v909 = vand.u32 %v908, 4294901760
    %910 = vmatpush.msra.mxu0 %v909
    %v911 = vand.u32 %v829, 4294901760
    %v912 = vsub.f32 %v829, %v911
    %v913 = vand.u32 %v912, 4294901760
    %v914 = vsub.f32 %v912, %v913
    %v915 = vand.u32 %v914, 4294901760
    %916 = vmatpush.msra.mxu0 %v915
    %v917 = vand.u32 %v856, 4294901760
    %918 = vmatmul.f32.gmra.mxu0 %v917
    %v919 = vpop.f32.mrf.mxu0
    %v920 = vadd.f32 %v884, %v919
    %921 = vdwg.mxu0
    %922 = vmatpush.msra.mxu0 0.0
    %923 = vmatpush.msra.mxu0 0.0
    %924 = vmatpush.msra.mxu0 0.0
    %925 = vmatpush.msra.mxu0 0.0
    %926 = vmatpush.msra.mxu0 0.0
    %927 = vmatpush.msra.mxu0 0.0
    %928 = vmatpush.msra.mxu0 0.0
    %929 = vmatpush.msra.mxu0 0.0
    %930 = vmatpush.msra.mxu0 0.0
    %931 = vmatpush.msra.mxu0 0.0
    %932 = vmatpush.msra.mxu0 0.0
    %933 = vmatpush.msra.mxu0 0.0
    %934 = vmatpush.msra.mxu0 0.0
    %v935 = vand.u32 %v844, 4294901760
    %v936 = vsub.f32 %v844, %v935
    %937 = vmatpush.msra.mxu0 %v936
    %v938 = vand.u32 %v838, 4294901760
    %v939 = vsub.f32 %v838, %v938
    %940 = vmatpush.msra.mxu0 %v939
    %v941 = vand.u32 %v829, 4294901760
    %v942 = vsub.f32 %v829, %v941
    %943 = vmatpush.msra.mxu0 %v942
    %v944 = vand.u32 %v856, 4294901760
    %v945 = vsub.f32 %v856, %v944
    %946 = vmatmul.f32.gmra.mxu0 %v945
    %v947 = vpop.f32.mrf.mxu0
    %v948 = vadd.f32 %v920, %v947
    %949 = vdwg.mxu0
    %950 = vmatpush.msra.mxu0 0.0
    %951 = vmatpush.msra.mxu0 0.0
    %952 = vmatpush.msra.mxu0 0.0
    %953 = vmatpush.msra.mxu0 0.0
    %954 = vmatpush.msra.mxu0 0.0
    %955 = vmatpush.msra.mxu0 0.0
    %956 = vmatpush.msra.mxu0 0.0
    %957 = vmatpush.msra.mxu0 0.0
    %958 = vmatpush.msra.mxu0 0.0
    %959 = vmatpush.msra.mxu0 0.0
    %960 = vmatpush.msra.mxu0 0.0
    %961 = vmatpush.msra.mxu0 0.0
    %962 = vmatpush.msra.mxu0 0.0
    %v963 = vand.u32 %v844, 4294901760
    %964 = vmatpush.msra.mxu0 %v963
    %v965 = vand.u32 %v838, 4294901760
    %966 = vmatpush.msra.mxu0 %v965
    %v967 = vand.u32 %v829, 4294901760
    %968 = vmatpush.msra.mxu0 %v967
    %v969 = vand.u32 %v856, 4294901760
    %v970 = vsub.f32 %v856, %v969
    %v971 = vand.u32 %v970, 4294901760
    %972 = vmatmul.f32.gmra.mxu0 %v971
    %v973 = vpop.f32.mrf.mxu0
    %v974 = vadd.f32 %v948, %v973
    %975 = vdwg.mxu0
    %976 = vmatpush.msra.mxu0 0.0
    %977 = vmatpush.msra.mxu0 0.0
    %978 = vmatpush.msra.mxu0 0.0
    %979 = vmatpush.msra.mxu0 0.0
    %980 = vmatpush.msra.mxu0 0.0
    %981 = vmatpush.msra.mxu0 0.0
    %982 = vmatpush.msra.mxu0 0.0
    %983 = vmatpush.msra.mxu0 0.0
    %984 = vmatpush.msra.mxu0 0.0
    %985 = vmatpush.msra.mxu0 0.0
    %986 = vmatpush.msra.mxu0 0.0
    %987 = vmatpush.msra.mxu0 0.0
    %988 = vmatpush.msra.mxu0 0.0
    %v989 = vand.u32 %v844, 4294901760
    %v990 = vsub.f32 %v844, %v989
    %v991 = vand.u32 %v990, 4294901760
    %992 = vmatpush.msra.mxu0 %v991
    %v993 = vand.u32 %v838, 4294901760
    %v994 = vsub.f32 %v838, %v993
    %v995 = vand.u32 %v994, 4294901760
    %996 = vmatpush.msra.mxu0 %v995
    %v997 = vand.u32 %v829, 4294901760
    %v998 = vsub.f32 %v829, %v997
    %v999 = vand.u32 %v998, 4294901760
    %1000 = vmatpush.msra.mxu0 %v999
    %v1001 = vand.u32 %v856, 4294901760
    %1002 = vmatmul.f32.gmra.mxu0 %v1001
    %v1003 = vpop.f32.mrf.mxu0
    %v1004 = vadd.f32 %v974, %v1003
    %1005 = vdwg.mxu0
    %1006 = vmatpush.msra.mxu0 0.0
    %1007 = vmatpush.msra.mxu0 0.0
    %1008 = vmatpush.msra.mxu0 0.0
    %1009 = vmatpush.msra.mxu0 0.0
    %1010 = vmatpush.msra.mxu0 0.0
    %1011 = vmatpush.msra.mxu0 0.0
    %1012 = vmatpush.msra.mxu0 0.0
    %1013 = vmatpush.msra.mxu0 0.0
    %1014 = vmatpush.msra.mxu0 0.0
    %1015 = vmatpush.msra.mxu0 0.0
    %1016 = vmatpush.msra.mxu0 0.0
    %1017 = vmatpush.msra.mxu0 0.0
    %1018 = vmatpush.msra.mxu0 0.0
    %v1019 = vand.u32 %v844, 4294901760
    %1020 = vmatpush.msra.mxu0 %v1019
    %v1021 = vand.u32 %v838, 4294901760
    %1022 = vmatpush.msra.mxu0 %v1021
    %v1023 = vand.u32 %v829, 4294901760
    %1024 = vmatpush.msra.mxu0 %v1023
    %v1025 = vand.u32 %v856, 4294901760
    %1026 = vmatmul.f32.gmra.mxu0 %v1025
    %v1027 = vpop.f32.mrf.mxu0
    %v1028 = vadd.f32 %v1004, %v1027
    %1029 = vdwg.mxu0
    %1030 = vmatpush.msra.mxu0 0.0
    %1031 = vmatpush.msra.mxu0 0.0
    %1032 = vmatpush.msra.mxu0 0.0
    %1033 = vmatpush.msra.mxu0 0.0
    %1034 = vmatpush.msra.mxu0 0.0
    %1035 = vmatpush.msra.mxu0 0.0
    %1036 = vmatpush.msra.mxu0 0.0
    %1037 = vmatpush.msra.mxu0 0.0
    %1038 = vmatpush.msra.mxu0 0.0
    %1039 = vmatpush.msra.mxu0 0.0
    %1040 = vmatpush.msra.mxu0 0.0
    %1041 = vmatpush.msra.mxu0 0.0
    %1042 = vmatpush.msra.mxu0 0.0
    %v1043 = vand.u32 %v846, 4294901760
    %1044 = vmatpush.msra.mxu0 %v1043
    %v1045 = vand.u32 %v840, 4294901760
    %1046 = vmatpush.msra.mxu0 %v1045
    %v1047 = vand.u32 %v833, 4294901760
    %1048 = vmatpush.msra.mxu0 %v1047
    %v1049 = vand.u32 %v856, 4294901760
    %v1050 = vsub.f32 %v856, %v1049
    %v1051 = vand.u32 %v1050, 4294901760
    %v1052 = vsub.f32 %v1050, %v1051
    %v1053 = vand.u32 %v1052, 4294901760
    %1054 = vmatmul.f32.gmra.mxu0 %v1053
    %v1055 = vpop.f32.mrf.mxu0
    %v1056 = vadd.f32 %v852, %v1055
    %1057 = vdwg.mxu0
    %1058 = vmatpush.msra.mxu0 0.0
    %1059 = vmatpush.msra.mxu0 0.0
    %1060 = vmatpush.msra.mxu0 0.0
    %1061 = vmatpush.msra.mxu0 0.0
    %1062 = vmatpush.msra.mxu0 0.0
    %1063 = vmatpush.msra.mxu0 0.0
    %1064 = vmatpush.msra.mxu0 0.0
    %1065 = vmatpush.msra.mxu0 0.0
    %1066 = vmatpush.msra.mxu0 0.0
    %1067 = vmatpush.msra.mxu0 0.0
    %1068 = vmatpush.msra.mxu0 0.0
    %1069 = vmatpush.msra.mxu0 0.0
    %1070 = vmatpush.msra.mxu0 0.0
    %v1071 = vand.u32 %v846, 4294901760
    %v1072 = vsub.f32 %v846, %v1071
    %v1073 = vand.u32 %v1072, 4294901760
    %v1074 = vsub.f32 %v1072, %v1073
    %v1075 = vand.u32 %v1074, 4294901760
    %1076 = vmatpush.msra.mxu0 %v1075
    %v1077 = vand.u32 %v840, 4294901760
    %v1078 = vsub.f32 %v840, %v1077
    %v1079 = vand.u32 %v1078, 4294901760
    %v1080 = vsub.f32 %v1078, %v1079
    %v1081 = vand.u32 %v1080, 4294901760
    %1082 = vmatpush.msra.mxu0 %v1081
    %v1083 = vand.u32 %v833, 4294901760
    %v1084 = vsub.f32 %v833, %v1083
    %v1085 = vand.u32 %v1084, 4294901760
    %v1086 = vsub.f32 %v1084, %v1085
    %v1087 = vand.u32 %v1086, 4294901760
    %1088 = vmatpush.msra.mxu0 %v1087
    %v1089 = vand.u32 %v856, 4294901760
    %1090 = vmatmul.f32.gmra.mxu0 %v1089
    %v1091 = vpop.f32.mrf.mxu0
    %v1092 = vadd.f32 %v1056, %v1091
    %1093 = vdwg.mxu0
    %1094 = vmatpush.msra.mxu0 0.0
    %1095 = vmatpush.msra.mxu0 0.0
    %1096 = vmatpush.msra.mxu0 0.0
    %1097 = vmatpush.msra.mxu0 0.0
    %1098 = vmatpush.msra.mxu0 0.0
    %1099 = vmatpush.msra.mxu0 0.0
    %1100 = vmatpush.msra.mxu0 0.0
    %1101 = vmatpush.msra.mxu0 0.0
    %1102 = vmatpush.msra.mxu0 0.0
    %1103 = vmatpush.msra.mxu0 0.0
    %1104 = vmatpush.msra.mxu0 0.0
    %1105 = vmatpush.msra.mxu0 0.0
    %1106 = vmatpush.msra.mxu0 0.0
    %v1107 = vand.u32 %v846, 4294901760
    %v1108 = vsub.f32 %v846, %v1107
    %1109 = vmatpush.msra.mxu0 %v1108
    %v1110 = vand.u32 %v840, 4294901760
    %v1111 = vsub.f32 %v840, %v1110
    %1112 = vmatpush.msra.mxu0 %v1111
    %v1113 = vand.u32 %v833, 4294901760
    %v1114 = vsub.f32 %v833, %v1113
    %1115 = vmatpush.msra.mxu0 %v1114
    %v1116 = vand.u32 %v856, 4294901760
    %v1117 = vsub.f32 %v856, %v1116
    %1118 = vmatmul.f32.gmra.mxu0 %v1117
    %v1119 = vpop.f32.mrf.mxu0
    %v1120 = vadd.f32 %v1092, %v1119
    %1121 = vdwg.mxu0
    %1122 = vmatpush.msra.mxu0 0.0
    %1123 = vmatpush.msra.mxu0 0.0
    %1124 = vmatpush.msra.mxu0 0.0
    %1125 = vmatpush.msra.mxu0 0.0
    %1126 = vmatpush.msra.mxu0 0.0
    %1127 = vmatpush.msra.mxu0 0.0
    %1128 = vmatpush.msra.mxu0 0.0
    %1129 = vmatpush.msra.mxu0 0.0
    %1130 = vmatpush.msra.mxu0 0.0
    %1131 = vmatpush.msra.mxu0 0.0
    %1132 = vmatpush.msra.mxu0 0.0
    %1133 = vmatpush.msra.mxu0 0.0
    %1134 = vmatpush.msra.mxu0 0.0
    %v1135 = vand.u32 %v846, 4294901760
    %1136 = vmatpush.msra.mxu0 %v1135
    %v1137 = vand.u32 %v840, 4294901760
    %1138 = vmatpush.msra.mxu0 %v1137
    %v1139 = vand.u32 %v833, 4294901760
    %1140 = vmatpush.msra.mxu0 %v1139
    %v1141 = vand.u32 %v856, 4294901760
    %v1142 = vsub.f32 %v856, %v1141
    %v1143 = vand.u32 %v1142, 4294901760
    %1144 = vmatmul.f32.gmra.mxu0 %v1143
    %v1145 = vpop.f32.mrf.mxu0
    %v1146 = vadd.f32 %v1120, %v1145
    %1147 = vdwg.mxu0
    %1148 = vmatpush.msra.mxu0 0.0
    %1149 = vmatpush.msra.mxu0 0.0
    %1150 = vmatpush.msra.mxu0 0.0
    %1151 = vmatpush.msra.mxu0 0.0
    %1152 = vmatpush.msra.mxu0 0.0
    %1153 = vmatpush.msra.mxu0 0.0
    %1154 = vmatpush.msra.mxu0 0.0
    %1155 = vmatpush.msra.mxu0 0.0
    %1156 = vmatpush.msra.mxu0 0.0
    %1157 = vmatpush.msra.mxu0 0.0
    %1158 = vmatpush.msra.mxu0 0.0
    %1159 = vmatpush.msra.mxu0 0.0
    %1160 = vmatpush.msra.mxu0 0.0
    %v1161 = vand.u32 %v846, 4294901760
    %v1162 = vsub.f32 %v846, %v1161
    %v1163 = vand.u32 %v1162, 4294901760
    %1164 = vmatpush.msra.mxu0 %v1163
    %v1165 = vand.u32 %v840, 4294901760
    %v1166 = vsub.f32 %v840, %v1165
    %v1167 = vand.u32 %v1166, 4294901760
    %1168 = vmatpush.msra.mxu0 %v1167
    %v1169 = vand.u32 %v833, 4294901760
    %v1170 = vsub.f32 %v833, %v1169
    %v1171 = vand.u32 %v1170, 4294901760
    %1172 = vmatpush.msra.mxu0 %v1171
    %v1173 = vand.u32 %v856, 4294901760
    %1174 = vmatmul.f32.gmra.mxu0 %v1173
    %v1175 = vpop.f32.mrf.mxu0
    %v1176 = vadd.f32 %v1146, %v1175
    %1177 = vdwg.mxu0
    %1178 = vmatpush.msra.mxu0 0.0
    %1179 = vmatpush.msra.mxu0 0.0
    %1180 = vmatpush.msra.mxu0 0.0
    %1181 = vmatpush.msra.mxu0 0.0
    %1182 = vmatpush.msra.mxu0 0.0
    %1183 = vmatpush.msra.mxu0 0.0
    %1184 = vmatpush.msra.mxu0 0.0
    %1185 = vmatpush.msra.mxu0 0.0
    %1186 = vmatpush.msra.mxu0 0.0
    %1187 = vmatpush.msra.mxu0 0.0
    %1188 = vmatpush.msra.mxu0 0.0
    %1189 = vmatpush.msra.mxu0 0.0
    %1190 = vmatpush.msra.mxu0 0.0
    %v1191 = vand.u32 %v846, 4294901760
    %1192 = vmatpush.msra.mxu0 %v1191
    %v1193 = vand.u32 %v840, 4294901760
    %1194 = vmatpush.msra.mxu0 %v1193
    %v1195 = vand.u32 %v833, 4294901760
    %1196 = vmatpush.msra.mxu0 %v1195
    %v1197 = vand.u32 %v856, 4294901760
    %1198 = vmatmul.f32.gmra.mxu0 %v1197
    %v1199 = vpop.f32.mrf.mxu0
    %v1200 = vadd.f32 %v1176, %v1199
    %1201 = vdwg.mxu0
    %v1202 = vxor.u32 %v1028, 2147483648
    %v1203 = vxor.u32 %v1200, 2147483648
    %v1204 = vmul.f32 %v1202, 1.442695
    %v1205 = vpow.pop %v1204
    %v1206 = vmul.f32 %v1203, 1.442695
    %v1207 = vpow.pop %v1206
    %v1208 = vadd.f32 %v1205, 1.0
    %v1209 = vadd.f32 %v1207, 1.0
    %v1210 = vrcp.pop %v1208
    %v1211 = vmul.f32 %v1208, %v1210
    %v1212 = vsub.f32 1.0, %v1211
    %v1213 = vmul.f32 %v1210, %v1212
    %v1214 = vadd.f32 %v1210, %v1213
    %vm1215 = vweird.f32 %v1208
    %vm1216 = vweird.f32 %v1210
    %vm1217 = vmor %vm1215, %vm1216
    %v1218 = vsel %vm1217, %v1210, %v1214
    %v1219 = vand.u32 2147483647, %v1208
    %vm1220 = vcmp.eq.f32.partialorder %v1219, 8.507059e+37
    %v1221 = vand.u32 %v1208, 2147483648
    %v1222 = vor.u32 1.1754944e-38, %v1221
    %v1223 = vsel %vm1220, %v1222, %v1218
    %v1224 = vmul.f32 1.0, %v1223
    %v1225 = vrcp.pop %v1209
    %v1226 = vmul.f32 %v1209, %v1225
    %v1227 = vsub.f32 1.0, %v1226
    %v1228 = vmul.f32 %v1225, %v1227
    %v1229 = vadd.f32 %v1225, %v1228
    %vm1230 = vweird.f32 %v1209
    %vm1231 = vweird.f32 %v1225
    %vm1232 = vmor %vm1230, %vm1231
    %v1233 = vsel %vm1232, %v1225, %v1229
    %v1234 = vand.u32 2147483647, %v1209
    %vm1235 = vcmp.eq.f32.partialorder %v1234, 8.507059e+37
    %v1236 = vand.u32 %v1209, 2147483648
    %v1237 = vor.u32 1.1754944e-38, %v1236
    %v1238 = vsel %vm1235, %v1237, %v1233
    %v1239 = vmul.f32 1.0, %v1238
    %v1240 = vmul.f32 %v1028, %v1224
    %v1241 = vmul.f32 %v1200, %v1239
    %1242 = vset.pattern.permute.xlu0 1
    %1243 = vperm.xlu0 %1242, %v90
    %v1244 = vpop.permute.xlu0 %1243
    %vm1246 = vcmask 64512
    %v1248 = vsel %vm1246, %v88, 0
    %1250 = vmatpush.msra.mxu0 0.0
    %1251 = vmatpush.msra.mxu0 0.0
    %1252 = vmatpush.msra.mxu0 0.0
    %1253 = vmatpush.msra.mxu0 0.0
    %1254 = vmatpush.msra.mxu0 0.0
    %1255 = vmatpush.msra.mxu0 0.0
    %1256 = vmatpush.msra.mxu0 0.0
    %1257 = vmatpush.msra.mxu0 0.0
    %1258 = vmatpush.msra.mxu0 0.0
    %1259 = vmatpush.msra.mxu0 0.0
    %1260 = vmatpush.msra.mxu0 0.0
    %1261 = vmatpush.msra.mxu0 0.0
    %1262 = vmatpush.msra.mxu0 0.0
    %1263 = vmatpush.msra.mxu0 0.0
    %1264 = vmatpush.msra.mxu0 0.0
    %v1265 = vand.u32 %v1240, 4294901760
    %1266 = vmatpush.msra.mxu0 %v1265
    %v1267 = vand.u32 %v1248, 4294901760
    %v1268 = vsub.f32 %v1248, %v1267
    %v1269 = vand.u32 %v1268, 4294901760
    %v1270 = vsub.f32 %v1268, %v1269
    %v1271 = vand.u32 %v1270, 4294901760
    %1272 = vmatmul.f32.gmra.mxu0 %v1271
    %v1273 = vpop.f32.mrf.mxu0
    %v1274 = vadd.f32 %v1244, %v1273
    %1275 = vdwg.mxu0
    %1276 = vmatpush.msra.mxu0 0.0
    %1277 = vmatpush.msra.mxu0 0.0
    %1278 = vmatpush.msra.mxu0 0.0
    %1279 = vmatpush.msra.mxu0 0.0
    %1280 = vmatpush.msra.mxu0 0.0
    %1281 = vmatpush.msra.mxu0 0.0
    %1282 = vmatpush.msra.mxu0 0.0
    %1283 = vmatpush.msra.mxu0 0.0
    %1284 = vmatpush.msra.mxu0 0.0
    %1285 = vmatpush.msra.mxu0 0.0
    %1286 = vmatpush.msra.mxu0 0.0
    %1287 = vmatpush.msra.mxu0 0.0
    %1288 = vmatpush.msra.mxu0 0.0
    %1289 = vmatpush.msra.mxu0 0.0
    %1290 = vmatpush.msra.mxu0 0.0
    %v1291 = vand.u32 %v1240, 4294901760
    %v1292 = vsub.f32 %v1240, %v1291
    %v1293 = vand.u32 %v1292, 4294901760
    %v1294 = vsub.f32 %v1292, %v1293
    %v1295 = vand.u32 %v1294, 4294901760
    %1296 = vmatpush.msra.mxu0 %v1295
    %v1297 = vand.u32 %v1248, 4294901760
    %1298 = vmatmul.f32.gmra.mxu0 %v1297
    %v1299 = vpop.f32.mrf.mxu0
    %v1300 = vadd.f32 %v1274, %v1299
    %1301 = vdwg.mxu0
    %1302 = vmatpush.msra.mxu0 0.0
    %1303 = vmatpush.msra.mxu0 0.0
    %1304 = vmatpush.msra.mxu0 0.0
    %1305 = vmatpush.msra.mxu0 0.0
    %1306 = vmatpush.msra.mxu0 0.0
    %1307 = vmatpush.msra.mxu0 0.0
    %1308 = vmatpush.msra.mxu0 0.0
    %1309 = vmatpush.msra.mxu0 0.0
    %1310 = vmatpush.msra.mxu0 0.0
    %1311 = vmatpush.msra.mxu0 0.0
    %1312 = vmatpush.msra.mxu0 0.0
    %1313 = vmatpush.msra.mxu0 0.0
    %1314 = vmatpush.msra.mxu0 0.0
    %1315 = vmatpush.msra.mxu0 0.0
    %1316 = vmatpush.msra.mxu0 0.0
    %v1317 = vand.u32 %v1240, 4294901760
    %v1318 = vsub.f32 %v1240, %v1317
    %1319 = vmatpush.msra.mxu0 %v1318
    %v1320 = vand.u32 %v1248, 4294901760
    %v1321 = vsub.f32 %v1248, %v1320
    %1322 = vmatmul.f32.gmra.mxu0 %v1321
    %v1323 = vpop.f32.mrf.mxu0
    %v1324 = vadd.f32 %v1300, %v1323
    %1325 = vdwg.mxu0
    %1326 = vmatpush.msra.mxu0 0.0
    %1327 = vmatpush.msra.mxu0 0.0
    %1328 = vmatpush.msra.mxu0 0.0
    %1329 = vmatpush.msra.mxu0 0.0
    %1330 = vmatpush.msra.mxu0 0.0
    %1331 = vmatpush.msra.mxu0 0.0
    %1332 = vmatpush.msra.mxu0 0.0
    %1333 = vmatpush.msra.mxu0 0.0
    %1334 = vmatpush.msra.mxu0 0.0
    %1335 = vmatpush.msra.mxu0 0.0
    %1336 = vmatpush.msra.mxu0 0.0
    %1337 = vmatpush.msra.mxu0 0.0
    %1338 = vmatpush.msra.mxu0 0.0
    %1339 = vmatpush.msra.mxu0 0.0
    %1340 = vmatpush.msra.mxu0 0.0
    %v1341 = vand.u32 %v1240, 4294901760
    %1342 = vmatpush.msra.mxu0 %v1341
    %v1343 = vand.u32 %v1248, 4294901760
    %v1344 = vsub.f32 %v1248, %v1343
    %v1345 = vand.u32 %v1344, 4294901760
    %1346 = vmatmul.f32.gmra.mxu0 %v1345
    %v1347 = vpop.f32.mrf.mxu0
    %v1348 = vadd.f32 %v1324, %v1347
    %1349 = vdwg.mxu0
    %1350 = vmatpush.msra.mxu0 0.0
    %1351 = vmatpush.msra.mxu0 0.0
    %1352 = vmatpush.msra.mxu0 0.0
    %1353 = vmatpush.msra.mxu0 0.0
    %1354 = vmatpush.msra.mxu0 0.0
    %1355 = vmatpush.msra.mxu0 0.0
    %1356 = vmatpush.msra.mxu0 0.0
    %1357 = vmatpush.msra.mxu0 0.0
    %1358 = vmatpush.msra.mxu0 0.0
    %1359 = vmatpush.msra.mxu0 0.0
    %1360 = vmatpush.msra.mxu0 0.0
    %1361 = vmatpush.msra.mxu0 0.0
    %1362 = vmatpush.msra.mxu0 0.0
    %1363 = vmatpush.msra.mxu0 0.0
    %1364 = vmatpush.msra.mxu0 0.0
    %v1365 = vand.u32 %v1240, 4294901760
    %v1366 = vsub.f32 %v1240, %v1365
    %v1367 = vand.u32 %v1366, 4294901760
    %1368 = vmatpush.msra.mxu0 %v1367
    %v1369 = vand.u32 %v1248, 4294901760
    %1370 = vmatmul.f32.gmra.mxu0 %v1369
    %v1371 = vpop.f32.mrf.mxu0
    %v1372 = vadd.f32 %v1348, %v1371
    %1373 = vdwg.mxu0
    %1374 = vmatpush.msra.mxu0 0.0
    %1375 = vmatpush.msra.mxu0 0.0
    %1376 = vmatpush.msra.mxu0 0.0
    %1377 = vmatpush.msra.mxu0 0.0
    %1378 = vmatpush.msra.mxu0 0.0
    %1379 = vmatpush.msra.mxu0 0.0
    %1380 = vmatpush.msra.mxu0 0.0
    %1381 = vmatpush.msra.mxu0 0.0
    %1382 = vmatpush.msra.mxu0 0.0
    %1383 = vmatpush.msra.mxu0 0.0
    %1384 = vmatpush.msra.mxu0 0.0
    %1385 = vmatpush.msra.mxu0 0.0
    %1386 = vmatpush.msra.mxu0 0.0
    %1387 = vmatpush.msra.mxu0 0.0
    %1388 = vmatpush.msra.mxu0 0.0
    %v1389 = vand.u32 %v1240, 4294901760
    %1390 = vmatpush.msra.mxu0 %v1389
    %v1391 = vand.u32 %v1248, 4294901760
    %1392 = vmatmul.f32.gmra.mxu0 %v1391
    %v1393 = vpop.f32.mrf.mxu0
    %v1394 = vadd.f32 %v1372, %v1393
    %1395 = vdwg.mxu0
    %1396 = vmatpush.msra.mxu0 0.0
    %1397 = vmatpush.msra.mxu0 0.0
    %1398 = vmatpush.msra.mxu0 0.0
    %1399 = vmatpush.msra.mxu0 0.0
    %1400 = vmatpush.msra.mxu0 0.0
    %1401 = vmatpush.msra.mxu0 0.0
    %1402 = vmatpush.msra.mxu0 0.0
    %1403 = vmatpush.msra.mxu0 0.0
    %1404 = vmatpush.msra.mxu0 0.0
    %1405 = vmatpush.msra.mxu0 0.0
    %1406 = vmatpush.msra.mxu0 0.0
    %1407 = vmatpush.msra.mxu0 0.0
    %1408 = vmatpush.msra.mxu0 0.0
    %1409 = vmatpush.msra.mxu0 0.0
    %1410 = vmatpush.msra.mxu0 0.0
    %v1411 = vand.u32 %v1241, 4294901760
    %1412 = vmatpush.msra.mxu0 %v1411
    %v1413 = vand.u32 %v1248, 4294901760
    %v1414 = vsub.f32 %v1248, %v1413
    %v1415 = vand.u32 %v1414, 4294901760
    %v1416 = vsub.f32 %v1414, %v1415
    %v1417 = vand.u32 %v1416, 4294901760
    %1418 = vmatmul.f32.gmra.mxu0 %v1417
    %v1419 = vpop.f32.mrf.mxu0
    %v1420 = vadd.f32 %v1244, %v1419
    %1421 = vdwg.mxu0
    %1422 = vmatpush.msra.mxu0 0.0
    %1423 = vmatpush.msra.mxu0 0.0
    %1424 = vmatpush.msra.mxu0 0.0
    %1425 = vmatpush.msra.mxu0 0.0
    %1426 = vmatpush.msra.mxu0 0.0
    %1427 = vmatpush.msra.mxu0 0.0
    %1428 = vmatpush.msra.mxu0 0.0
    %1429 = vmatpush.msra.mxu0 0.0
    %1430 = vmatpush.msra.mxu0 0.0
    %1431 = vmatpush.msra.mxu0 0.0
    %1432 = vmatpush.msra.mxu0 0.0
    %1433 = vmatpush.msra.mxu0 0.0
    %1434 = vmatpush.msra.mxu0 0.0
    %1435 = vmatpush.msra.mxu0 0.0
    %1436 = vmatpush.msra.mxu0 0.0
    %v1437 = vand.u32 %v1241, 4294901760
    %v1438 = vsub.f32 %v1241, %v1437
    %v1439 = vand.u32 %v1438, 4294901760
    %v1440 = vsub.f32 %v1438, %v1439
    %v1441 = vand.u32 %v1440, 4294901760
    %1442 = vmatpush.msra.mxu0 %v1441
    %v1443 = vand.u32 %v1248, 4294901760
    %1444 = vmatmul.f32.gmra.mxu0 %v1443
    %v1445 = vpop.f32.mrf.mxu0
    %v1446 = vadd.f32 %v1420, %v1445
    %1447 = vdwg.mxu0
    %1448 = vmatpush.msra.mxu0 0.0
    %1449 = vmatpush.msra.mxu0 0.0
    %1450 = vmatpush.msra.mxu0 0.0
    %1451 = vmatpush.msra.mxu0 0.0
    %1452 = vmatpush.msra.mxu0 0.0
    %1453 = vmatpush.msra.mxu0 0.0
    %1454 = vmatpush.msra.mxu0 0.0
    %1455 = vmatpush.msra.mxu0 0.0
    %1456 = vmatpush.msra.mxu0 0.0
    %1457 = vmatpush.msra.mxu0 0.0
    %1458 = vmatpush.msra.mxu0 0.0
    %1459 = vmatpush.msra.mxu0 0.0
    %1460 = vmatpush.msra.mxu0 0.0
    %1461 = vmatpush.msra.mxu0 0.0
    %1462 = vmatpush.msra.mxu0 0.0
    %v1463 = vand.u32 %v1241, 4294901760
    %v1464 = vsub.f32 %v1241, %v1463
    %1465 = vmatpush.msra.mxu0 %v1464
    %v1466 = vand.u32 %v1248, 4294901760
    %v1467 = vsub.f32 %v1248, %v1466
    %1468 = vmatmul.f32.gmra.mxu0 %v1467
    %v1469 = vpop.f32.mrf.mxu0
    %v1470 = vadd.f32 %v1446, %v1469
    %1471 = vdwg.mxu0
    %1472 = vmatpush.msra.mxu0 0.0
    %1473 = vmatpush.msra.mxu0 0.0
    %1474 = vmatpush.msra.mxu0 0.0
    %1475 = vmatpush.msra.mxu0 0.0
    %1476 = vmatpush.msra.mxu0 0.0
    %1477 = vmatpush.msra.mxu0 0.0
    %1478 = vmatpush.msra.mxu0 0.0
    %1479 = vmatpush.msra.mxu0 0.0
    %1480 = vmatpush.msra.mxu0 0.0
    %1481 = vmatpush.msra.mxu0 0.0
    %1482 = vmatpush.msra.mxu0 0.0
    %1483 = vmatpush.msra.mxu0 0.0
    %1484 = vmatpush.msra.mxu0 0.0
    %1485 = vmatpush.msra.mxu0 0.0
    %1486 = vmatpush.msra.mxu0 0.0
    %v1487 = vand.u32 %v1241, 4294901760
    %1488 = vmatpush.msra.mxu0 %v1487
    %v1489 = vand.u32 %v1248, 4294901760
    %v1490 = vsub.f32 %v1248, %v1489
    %v1491 = vand.u32 %v1490, 4294901760
    %1492 = vmatmul.f32.gmra.mxu0 %v1491
    %v1493 = vpop.f32.mrf.mxu0
    %v1494 = vadd.f32 %v1470, %v1493
    %1495 = vdwg.mxu0
    %1496 = vmatpush.msra.mxu0 0.0
    %1497 = vmatpush.msra.mxu0 0.0
    %1498 = vmatpush.msra.mxu0 0.0
    %1499 = vmatpush.msra.mxu0 0.0
    %1500 = vmatpush.msra.mxu0 0.0
    %1501 = vmatpush.msra.mxu0 0.0
    %1502 = vmatpush.msra.mxu0 0.0
    %1503 = vmatpush.msra.mxu0 0.0
    %1504 = vmatpush.msra.mxu0 0.0
    %1505 = vmatpush.msra.mxu0 0.0
    %1506 = vmatpush.msra.mxu0 0.0
    %1507 = vmatpush.msra.mxu0 0.0
    %1508 = vmatpush.msra.mxu0 0.0
    %1509 = vmatpush.msra.mxu0 0.0
    %1510 = vmatpush.msra.mxu0 0.0
    %v1511 = vand.u32 %v1241, 4294901760
    %v1512 = vsub.f32 %v1241, %v1511
    %v1513 = vand.u32 %v1512, 4294901760
    %1514 = vmatpush.msra.mxu0 %v1513
    %v1515 = vand.u32 %v1248, 4294901760
    %1516 = vmatmul.f32.gmra.mxu0 %v1515
    %v1517 = vpop.f32.mrf.mxu0
    %v1518 = vadd.f32 %v1494, %v1517
    %1519 = vdwg.mxu0
    %1520 = vmatpush.msra.mxu0 0.0
    %1521 = vmatpush.msra.mxu0 0.0
    %1522 = vmatpush.msra.mxu0 0.0
    %1523 = vmatpush.msra.mxu0 0.0
    %1524 = vmatpush.msra.mxu0 0.0
    %1525 = vmatpush.msra.mxu0 0.0
    %1526 = vmatpush.msra.mxu0 0.0
    %1527 = vmatpush.msra.mxu0 0.0
    %1528 = vmatpush.msra.mxu0 0.0
    %1529 = vmatpush.msra.mxu0 0.0
    %1530 = vmatpush.msra.mxu0 0.0
    %1531 = vmatpush.msra.mxu0 0.0
    %1532 = vmatpush.msra.mxu0 0.0
    %1533 = vmatpush.msra.mxu0 0.0
    %1534 = vmatpush.msra.mxu0 0.0
    %v1535 = vand.u32 %v1241, 4294901760
    %1536 = vmatpush.msra.mxu0 %v1535
    %v1537 = vand.u32 %v1248, 4294901760
    %1538 = vmatmul.f32.gmra.mxu0 %v1537
    %v1539 = vpop.f32.mrf.mxu0
    %v1540 = vadd.f32 %v1518, %v1539
    %1541 = vdwg.mxu0
    %v1542 = vxor.u32 %v1394, 2147483648
    %v1543 = vxor.u32 %v1540, 2147483648
    %v1544 = vmul.f32 %v1542, 1.442695
    %v1545 = vpow.pop %v1544
    %v1546 = vmul.f32 %v1543, 1.442695
    %v1547 = vpow.pop %v1546
    %v1548 = vadd.f32 %v1545, 1.0
    %v1549 = vadd.f32 %v1547, 1.0
    %v1550 = vrcp.pop %v1548
    %v1551 = vmul.f32 %v1548, %v1550
    %v1552 = vsub.f32 1.0, %v1551
    %v1553 = vmul.f32 %v1550, %v1552
    %v1554 = vadd.f32 %v1550, %v1553
    %vm1555 = vweird.f32 %v1548
    %vm1556 = vweird.f32 %v1550
    %vm1557 = vmor %vm1555, %vm1556
    %v1558 = vsel %vm1557, %v1550, %v1554
    %v1559 = vand.u32 2147483647, %v1548
    %vm1560 = vcmp.eq.f32.partialorder %v1559, 8.507059e+37
    %v1561 = vand.u32 %v1548, 2147483648
    %v1562 = vor.u32 1.1754944e-38, %v1561
    %v1563 = vsel %vm1560, %v1562, %v1558
    %v1564 = vmul.f32 1.0, %v1563
    %v1565 = vrcp.pop %v1549
    %v1566 = vmul.f32 %v1549, %v1565
    %v1567 = vsub.f32 1.0, %v1566
    %v1568 = vmul.f32 %v1565, %v1567
    %v1569 = vadd.f32 %v1565, %v1568
    %vm1570 = vweird.f32 %v1549
    %vm1571 = vweird.f32 %v1565
    %vm1572 = vmor %vm1570, %vm1571
    %v1573 = vsel %vm1572, %v1565, %v1569
    %v1574 = vand.u32 2147483647, %v1549
    %vm1575 = vcmp.eq.f32.partialorder %v1574, 8.507059e+37
    %v1576 = vand.u32 %v1549, 2147483648
    %v1577 = vor.u32 1.1754944e-38, %v1576
    %v1578 = vsel %vm1575, %v1577, %v1573
    %v1579 = vmul.f32 1.0, %v1578
    %v1580 = vmul.f32 %v1394, %v1564
    %v1581 = vmul.f32 %v1540, %v1579
    %v1582 = vxor.u32 %v1580, 2147483648
    %v1583 = vxor.u32 %v1581, 2147483648
    %v1584 = vmul.f32 %v1582, 1.442695
    %v1585 = vpow.pop %v1584
    %v1586 = vmul.f32 %v1583, 1.442695
    %v1587 = vpow.pop %v1586
    %v1588 = vadd.f32 %v1585, 1.0
    %v1589 = vadd.f32 %v1587, 1.0
    %v1590 = vrcp.pop %v1588
    %v1591 = vmul.f32 %v1588, %v1590
    %v1592 = vsub.f32 1.0, %v1591
    %v1593 = vmul.f32 %v1590, %v1592
    %v1594 = vadd.f32 %v1590, %v1593
    %vm1595 = vweird.f32 %v1588
    %vm1596 = vweird.f32 %v1590
    %vm1597 = vmor %vm1595, %vm1596
    %v1598 = vsel %vm1597, %v1590, %v1594
    %v1599 = vand.u32 2147483647, %v1588
    %vm1600 = vcmp.eq.f32.partialorder %v1599, 8.507059e+37
    %v1601 = vand.u32 %v1588, 2147483648
    %v1602 = vor.u32 1.1754944e-38, %v1601
    %v1603 = vsel %vm1600, %v1602, %v1598
    %v1604 = vmul.f32 1.0, %v1603
    %v1605 = vrcp.pop %v1589
    %v1606 = vmul.f32 %v1589, %v1605
    %v1607 = vsub.f32 1.0, %v1606
    %v1608 = vmul.f32 %v1605, %v1607
    %v1609 = vadd.f32 %v1605, %v1608
    %vm1610 = vweird.f32 %v1589
    %vm1611 = vweird.f32 %v1605
    %vm1612 = vmor %vm1610, %vm1611
    %v1613 = vsel %vm1612, %v1605, %v1609
    %v1614 = vand.u32 2147483647, %v1589
    %vm1615 = vcmp.eq.f32.partialorder %v1614, 8.507059e+37
    %v1616 = vand.u32 %v1589, 2147483648
    %v1617 = vor.u32 1.1754944e-38, %v1616
    %v1618 = vsel %vm1615, %v1617, %v1613
    %v1619 = vmul.f32 1.0, %v1618
    %1620 = vrot.lane.b32.xlu0 %v829, 32
    %v1621 = vpop.permute.xlu0 %1620
    %1623 = vrot.lane.b32.xlu0 %v90, 126
    %v1624 = vpop.permute.xlu0 %1623
    %v1627 = vsel %vm1246, %v89, 0
    %1629 = vmatpush.msra.mxu0 0.0
    %1630 = vmatpush.msra.mxu0 0.0
    %1631 = vmatpush.msra.mxu0 0.0
    %1632 = vmatpush.msra.mxu0 0.0
    %1633 = vmatpush.msra.mxu0 0.0
    %1634 = vmatpush.msra.mxu0 0.0
    %1635 = vmatpush.msra.mxu0 0.0
    %1636 = vmatpush.msra.mxu0 0.0
    %1637 = vmatpush.msra.mxu0 0.0
    %1638 = vmatpush.msra.mxu0 0.0
    %1639 = vmatpush.msra.mxu0 0.0
    %1640 = vmatpush.msra.mxu0 0.0
    %1641 = vmatpush.msra.mxu0 0.0
    %1642 = vmatpush.msra.mxu0 0.0
    %1643 = vmatpush.msra.mxu0 0.0
    %v1644 = vand.u32 %v1621, 4294901760
    %1645 = vmatpush.msra.mxu0 %v1644
    %v1646 = vand.u32 %v1627, 4294901760
    %v1647 = vsub.f32 %v1627, %v1646
    %v1648 = vand.u32 %v1647, 4294901760
    %v1649 = vsub.f32 %v1647, %v1648
    %v1650 = vand.u32 %v1649, 4294901760
    %1651 = vmatmul.f32.gmra.mxu0 %v1650
    %v1652 = vpop.f32.mrf.mxu0
    %v1653 = vadd.f32 %v1624, %v1652
    %1654 = vdwg.mxu0
    %1655 = vmatpush.msra.mxu0 0.0
    %1656 = vmatpush.msra.mxu0 0.0
    %1657 = vmatpush.msra.mxu0 0.0
    %1658 = vmatpush.msra.mxu0 0.0
    %1659 = vmatpush.msra.mxu0 0.0
    %1660 = vmatpush.msra.mxu0 0.0
    %1661 = vmatpush.msra.mxu0 0.0
    %1662 = vmatpush.msra.mxu0 0.0
    %1663 = vmatpush.msra.mxu0 0.0
    %1664 = vmatpush.msra.mxu0 0.0
    %1665 = vmatpush.msra.mxu0 0.0
    %1666 = vmatpush.msra.mxu0 0.0
    %1667 = vmatpush.msra.mxu0 0.0
    %1668 = vmatpush.msra.mxu0 0.0
    %1669 = vmatpush.msra.mxu0 0.0
    %v1670 = vand.u32 %v1621, 4294901760
    %v1671 = vsub.f32 %v1621, %v1670
    %v1672 = vand.u32 %v1671, 4294901760
    %v1673 = vsub.f32 %v1671, %v1672
    %v1674 = vand.u32 %v1673, 4294901760
    %1675 = vmatpush.msra.mxu0 %v1674
    %v1676 = vand.u32 %v1627, 4294901760
    %1677 = vmatmul.f32.gmra.mxu0 %v1676
    %v1678 = vpop.f32.mrf.mxu0
    %v1679 = vadd.f32 %v1653, %v1678
    %1680 = vdwg.mxu0
    %1681 = vmatpush.msra.mxu0 0.0
    %1682 = vmatpush.msra.mxu0 0.0
    %1683 = vmatpush.msra.mxu0 0.0
    %1684 = vmatpush.msra.mxu0 0.0
    %1685 = vmatpush.msra.mxu0 0.0
    %1686 = vmatpush.msra.mxu0 0.0
    %1687 = vmatpush.msra.mxu0 0.0
    %1688 = vmatpush.msra.mxu0 0.0
    %1689 = vmatpush.msra.mxu0 0.0
    %1690 = vmatpush.msra.mxu0 0.0
    %1691 = vmatpush.msra.mxu0 0.0
    %1692 = vmatpush.msra.mxu0 0.0
    %1693 = vmatpush.msra.mxu0 0.0
    %1694 = vmatpush.msra.mxu0 0.0
    %1695 = vmatpush.msra.mxu0 0.0
    %v1696 = vand.u32 %v1621, 4294901760
    %v1697 = vsub.f32 %v1621, %v1696
    %1698 = vmatpush.msra.mxu0 %v1697
    %v1699 = vand.u32 %v1627, 4294901760
    %v1700 = vsub.f32 %v1627, %v1699
    %1701 = vmatmul.f32.gmra.mxu0 %v1700
    %v1702 = vpop.f32.mrf.mxu0
    %v1703 = vadd.f32 %v1679, %v1702
    %1704 = vdwg.mxu0
    %1705 = vmatpush.msra.mxu0 0.0
    %1706 = vmatpush.msra.mxu0 0.0
    %1707 = vmatpush.msra.mxu0 0.0
    %1708 = vmatpush.msra.mxu0 0.0
    %1709 = vmatpush.msra.mxu0 0.0
    %1710 = vmatpush.msra.mxu0 0.0
    %1711 = vmatpush.msra.mxu0 0.0
    %1712 = vmatpush.msra.mxu0 0.0
    %1713 = vmatpush.msra.mxu0 0.0
    %1714 = vmatpush.msra.mxu0 0.0
    %1715 = vmatpush.msra.mxu0 0.0
    %1716 = vmatpush.msra.mxu0 0.0
    %1717 = vmatpush.msra.mxu0 0.0
    %1718 = vmatpush.msra.mxu0 0.0
    %1719 = vmatpush.msra.mxu0 0.0
    %v1720 = vand.u32 %v1621, 4294901760
    %1721 = vmatpush.msra.mxu0 %v1720
    %v1722 = vand.u32 %v1627, 4294901760
    %v1723 = vsub.f32 %v1627, %v1722
    %v1724 = vand.u32 %v1723, 4294901760
    %1725 = vmatmul.f32.gmra.mxu0 %v1724
    %v1726 = vpop.f32.mrf.mxu0
    %v1727 = vadd.f32 %v1703, %v1726
    %1728 = vdwg.mxu0
    %1729 = vmatpush.msra.mxu0 0.0
    %1730 = vmatpush.msra.mxu0 0.0
    %1731 = vmatpush.msra.mxu0 0.0
    %1732 = vmatpush.msra.mxu0 0.0
    %1733 = vmatpush.msra.mxu0 0.0
    %1734 = vmatpush.msra.mxu0 0.0
    %1735 = vmatpush.msra.mxu0 0.0
    %1736 = vmatpush.msra.mxu0 0.0
    %1737 = vmatpush.msra.mxu0 0.0
    %1738 = vmatpush.msra.mxu0 0.0
    %1739 = vmatpush.msra.mxu0 0.0
    %1740 = vmatpush.msra.mxu0 0.0
    %1741 = vmatpush.msra.mxu0 0.0
    %1742 = vmatpush.msra.mxu0 0.0
    %1743 = vmatpush.msra.mxu0 0.0
    %v1744 = vand.u32 %v1621, 4294901760
    %v1745 = vsub.f32 %v1621, %v1744
    %v1746 = vand.u32 %v1745, 4294901760
    %1747 = vmatpush.msra.mxu0 %v1746
    %v1748 = vand.u32 %v1627, 4294901760
    %1749 = vmatmul.f32.gmra.mxu0 %v1748
    %v1750 = vpop.f32.mrf.mxu0
    %v1751 = vadd.f32 %v1727, %v1750
    %1752 = vdwg.mxu0
    %1753 = vmatpush.msra.mxu0 0.0
    %1754 = vmatpush.msra.mxu0 0.0
    %1755 = vmatpush.msra.mxu0 0.0
    %1756 = vmatpush.msra.mxu0 0.0
    %1757 = vmatpush.msra.mxu0 0.0
    %1758 = vmatpush.msra.mxu0 0.0
    %1759 = vmatpush.msra.mxu0 0.0
    %1760 = vmatpush.msra.mxu0 0.0
    %1761 = vmatpush.msra.mxu0 0.0
    %1762 = vmatpush.msra.mxu0 0.0
    %1763 = vmatpush.msra.mxu0 0.0
    %1764 = vmatpush.msra.mxu0 0.0
    %1765 = vmatpush.msra.mxu0 0.0
    %1766 = vmatpush.msra.mxu0 0.0
    %1767 = vmatpush.msra.mxu0 0.0
    %v1768 = vand.u32 %v1621, 4294901760
    %1769 = vmatpush.msra.mxu0 %v1768
    %v1770 = vand.u32 %v1627, 4294901760
    %1771 = vmatmul.f32.gmra.mxu0 %v1770
    %v1772 = vpop.f32.mrf.mxu0
    %v1773 = vadd.f32 %v1751, %v1772
    %1774 = vdwg.mxu0
    %1775 = vrot.lane.b32.xlu0 %v833, 32
    %v1776 = vpop.permute.xlu0 %1775
    %1778 = vmatpush.msra.mxu0 0.0
    %1779 = vmatpush.msra.mxu0 0.0
    %1780 = vmatpush.msra.mxu0 0.0
    %1781 = vmatpush.msra.mxu0 0.0
    %1782 = vmatpush.msra.mxu0 0.0
    %1783 = vmatpush.msra.mxu0 0.0
    %1784 = vmatpush.msra.mxu0 0.0
    %1785 = vmatpush.msra.mxu0 0.0
    %1786 = vmatpush.msra.mxu0 0.0
    %1787 = vmatpush.msra.mxu0 0.0
    %1788 = vmatpush.msra.mxu0 0.0
    %1789 = vmatpush.msra.mxu0 0.0
    %1790 = vmatpush.msra.mxu0 0.0
    %1791 = vmatpush.msra.mxu0 0.0
    %1792 = vmatpush.msra.mxu0 0.0
    %v1793 = vand.u32 %v1776, 4294901760
    %1794 = vmatpush.msra.mxu0 %v1793
    %v1795 = vand.u32 %v1627, 4294901760
    %v1796 = vsub.f32 %v1627, %v1795
    %v1797 = vand.u32 %v1796, 4294901760
    %v1798 = vsub.f32 %v1796, %v1797
    %v1799 = vand.u32 %v1798, 4294901760
    %1800 = vmatmul.f32.gmra.mxu0 %v1799
    %v1801 = vpop.f32.mrf.mxu0
    %v1802 = vadd.f32 %v1624, %v1801
    %1803 = vdwg.mxu0
    %1804 = vmatpush.msra.mxu0 0.0
    %1805 = vmatpush.msra.mxu0 0.0
    %1806 = vmatpush.msra.mxu0 0.0
    %1807 = vmatpush.msra.mxu0 0.0
    %1808 = vmatpush.msra.mxu0 0.0
    %1809 = vmatpush.msra.mxu0 0.0
    %1810 = vmatpush.msra.mxu0 0.0
    %1811 = vmatpush.msra.mxu0 0.0
    %1812 = vmatpush.msra.mxu0 0.0
    %1813 = vmatpush.msra.mxu0 0.0
    %1814 = vmatpush.msra.mxu0 0.0
    %1815 = vmatpush.msra.mxu0 0.0
    %1816 = vmatpush.msra.mxu0 0.0
    %1817 = vmatpush.msra.mxu0 0.0
    %1818 = vmatpush.msra.mxu0 0.0
    %v1819 = vand.u32 %v1776, 4294901760
    %v1820 = vsub.f32 %v1776, %v1819
    %v1821 = vand.u32 %v1820, 4294901760
    %v1822 = vsub.f32 %v1820, %v1821
    %v1823 = vand.u32 %v1822, 4294901760
    %1824 = vmatpush.msra.mxu0 %v1823
    %v1825 = vand.u32 %v1627, 4294901760
    %1826 = vmatmul.f32.gmra.mxu0 %v1825
    %v1827 = vpop.f32.mrf.mxu0
    %v1828 = vadd.f32 %v1802, %v1827
    %1829 = vdwg.mxu0
    %1830 = vmatpush.msra.mxu0 0.0
    %1831 = vmatpush.msra.mxu0 0.0
    %1832 = vmatpush.msra.mxu0 0.0
    %1833 = vmatpush.msra.mxu0 0.0
    %1834 = vmatpush.msra.mxu0 0.0
    %1835 = vmatpush.msra.mxu0 0.0
    %1836 = vmatpush.msra.mxu0 0.0
    %1837 = vmatpush.msra.mxu0 0.0
    %1838 = vmatpush.msra.mxu0 0.0
    %1839 = vmatpush.msra.mxu0 0.0
    %1840 = vmatpush.msra.mxu0 0.0
    %1841 = vmatpush.msra.mxu0 0.0
    %1842 = vmatpush.msra.mxu0 0.0
    %1843 = vmatpush.msra.mxu0 0.0
    %1844 = vmatpush.msra.mxu0 0.0
    %v1845 = vand.u32 %v1776, 4294901760
    %v1846 = vsub.f32 %v1776, %v1845
    %1847 = vmatpush.msra.mxu0 %v1846
    %v1848 = vand.u32 %v1627, 4294901760
    %v1849 = vsub.f32 %v1627, %v1848
    %1850 = vmatmul.f32.gmra.mxu0 %v1849
    %v1851 = vpop.f32.mrf.mxu0
    %v1852 = vadd.f32 %v1828, %v1851
    %1853 = vdwg.mxu0
    %1854 = vmatpush.msra.mxu0 0.0
    %1855 = vmatpush.msra.mxu0 0.0
    %1856 = vmatpush.msra.mxu0 0.0
    %1857 = vmatpush.msra.mxu0 0.0
    %1858 = vmatpush.msra.mxu0 0.0
    %1859 = vmatpush.msra.mxu0 0.0
    %1860 = vmatpush.msra.mxu0 0.0
    %1861 = vmatpush.msra.mxu0 0.0
    %1862 = vmatpush.msra.mxu0 0.0
    %1863 = vmatpush.msra.mxu0 0.0
    %1864 = vmatpush.msra.mxu0 0.0
    %1865 = vmatpush.msra.mxu0 0.0
    %1866 = vmatpush.msra.mxu0 0.0
    %1867 = vmatpush.msra.mxu0 0.0
    %1868 = vmatpush.msra.mxu0 0.0
    %v1869 = vand.u32 %v1776, 4294901760
    %1870 = vmatpush.msra.mxu0 %v1869
    %v1871 = vand.u32 %v1627, 4294901760
    %v1872 = vsub.f32 %v1627, %v1871
    %v1873 = vand.u32 %v1872, 4294901760
    %1874 = vmatmul.f32.gmra.mxu0 %v1873
    %v1875 = vpop.f32.mrf.mxu0
    %v1876 = vadd.f32 %v1852, %v1875
    %1877 = vdwg.mxu0
    %1878 = vmatpush.msra.mxu0 0.0
    %1879 = vmatpush.msra.mxu0 0.0
    %1880 = vmatpush.msra.mxu0 0.0
    %1881 = vmatpush.msra.mxu0 0.0
    %1882 = vmatpush.msra.mxu0 0.0
    %1883 = vmatpush.msra.mxu0 0.0
    %1884 = vmatpush.msra.mxu0 0.0
    %1885 = vmatpush.msra.mxu0 0.0
    %1886 = vmatpush.msra.mxu0 0.0
    %1887 = vmatpush.msra.mxu0 0.0
    %1888 = vmatpush.msra.mxu0 0.0
    %1889 = vmatpush.msra.mxu0 0.0
    %1890 = vmatpush.msra.mxu0 0.0
    %1891 = vmatpush.msra.mxu0 0.0
    %1892 = vmatpush.msra.mxu0 0.0
    %v1893 = vand.u32 %v1776, 4294901760
    %v1894 = vsub.f32 %v1776, %v1893
    %v1895 = vand.u32 %v1894, 4294901760
    %1896 = vmatpush.msra.mxu0 %v1895
    %v1897 = vand.u32 %v1627, 4294901760
    %1898 = vmatmul.f32.gmra.mxu0 %v1897
    %v1899 = vpop.f32.mrf.mxu0
    %v1900 = vadd.f32 %v1876, %v1899
    %1901 = vdwg.mxu0
    %1902 = vmatpush.msra.mxu0 0.0
    %1903 = vmatpush.msra.mxu0 0.0
    %1904 = vmatpush.msra.mxu0 0.0
    %1905 = vmatpush.msra.mxu0 0.0
    %1906 = vmatpush.msra.mxu0 0.0
    %1907 = vmatpush.msra.mxu0 0.0
    %1908 = vmatpush.msra.mxu0 0.0
    %1909 = vmatpush.msra.mxu0 0.0
    %1910 = vmatpush.msra.mxu0 0.0
    %1911 = vmatpush.msra.mxu0 0.0
    %1912 = vmatpush.msra.mxu0 0.0
    %1913 = vmatpush.msra.mxu0 0.0
    %1914 = vmatpush.msra.mxu0 0.0
    %1915 = vmatpush.msra.mxu0 0.0
    %1916 = vmatpush.msra.mxu0 0.0
    %v1917 = vand.u32 %v1776, 4294901760
    %1918 = vmatpush.msra.mxu0 %v1917
    %v1919 = vand.u32 %v1627, 4294901760
    %1920 = vmatmul.f32.gmra.mxu0 %v1919
    %v1921 = vpop.f32.mrf.mxu0
    %v1922 = vadd.f32 %v1900, %v1921
    %1923 = vdwg.mxu0
    %v1924 = vxor.u32 %v1773, 2147483648
    %v1925 = vxor.u32 %v1922, 2147483648
    %v1926 = vmul.f32 %v1924, 1.442695
    %v1927 = vpow.pop %v1926
    %v1928 = vmul.f32 %v1925, 1.442695
    %v1929 = vpow.pop %v1928
    %v1930 = vadd.f32 %v1927, 1.0
    %v1931 = vadd.f32 %v1929, 1.0
    %v1932 = vrcp.pop %v1930
    %v1933 = vmul.f32 %v1930, %v1932
    %v1934 = vsub.f32 1.0, %v1933
    %v1935 = vmul.f32 %v1932, %v1934
    %v1936 = vadd.f32 %v1932, %v1935
    %vm1937 = vweird.f32 %v1930
    %vm1938 = vweird.f32 %v1932
    %vm1939 = vmor %vm1937, %vm1938
    %v1940 = vsel %vm1939, %v1932, %v1936
    %v1941 = vand.u32 2147483647, %v1930
    %vm1942 = vcmp.eq.f32.partialorder %v1941, 8.507059e+37
    %v1943 = vand.u32 %v1930, 2147483648
    %v1944 = vor.u32 1.1754944e-38, %v1943
    %v1945 = vsel %vm1942, %v1944, %v1940
    %v1946 = vmul.f32 1.0, %v1945
    %v1947 = vrcp.pop %v1931
    %v1948 = vmul.f32 %v1931, %v1947
    %v1949 = vsub.f32 1.0, %v1948
    %v1950 = vmul.f32 %v1947, %v1949
    %v1951 = vadd.f32 %v1947, %v1950
    %vm1952 = vweird.f32 %v1931
    %vm1953 = vweird.f32 %v1947
    %vm1954 = vmor %vm1952, %vm1953
    %v1955 = vsel %vm1954, %v1947, %v1951
    %v1956 = vand.u32 2147483647, %v1931
    %vm1957 = vcmp.eq.f32.partialorder %v1956, 8.507059e+37
    %v1958 = vand.u32 %v1931, 2147483648
    %v1959 = vor.u32 1.1754944e-38, %v1958
    %v1960 = vsel %vm1957, %v1959, %v1955
    %v1961 = vmul.f32 1.0, %v1960
    %v1962 = vmul.f32 %v1773, %v1946
    %v1963 = vmul.f32 %v1922, %v1961
    %vm1964 = vcmask 261120
    %v1965 = vsel %vm1964, %v1604, 0.0
    %1966 = vadd.xlane.f32.xlu0 %v1965
    %v1967 = vpop.xlane.xlu0 %1966
    %v1968 = vsel %vm1964, %v1619, 0.0
    %1969 = vadd.xlane.f32.xlu0 %v1968
    %v1970 = vpop.xlane.xlu0 %1969
    %v1971 = vrcp.pop 32.0
    %v1972 = vmul.f32 32.0, %v1971
    %v1973 = vsub.f32 1.0, %v1972
    %v1974 = vmul.f32 %v1971, %v1973
    %v1975 = vadd.f32 %v1971, %v1974
    %vm1976 = vweird.f32 %v1971
    %v1977 = vsel %vm1976, %v1971, %v1975
    %v1978 = vmul.f32 %v1967, %v1977
    %v1979 = vmul.f32 %v1970, %v1977
    %v1980 = vmul.f32 %v1962, %v1978
    %v1981 = vmul.f32 %v1963, %v1979
    %v1982 = vmul.f32 %v1240, %v1604
    %v1983 = vmul.f32 %v1241, %v1619
    %v1984 = vxor.u32 %v1982, 2147483648
    %v1985 = vxor.u32 %v1983, 2147483648
    %v1986 = vmul.f32 %v1984, 1.442695
    %v1987 = vpow.pop %v1986
    %v1988 = vmul.f32 %v1985, 1.442695
    %v1989 = vpow.pop %v1988
    %v1990 = vadd.f32 %v1987, 1.0
    %v1991 = vadd.f32 %v1989, 1.0
    %v1992 = vrcp.pop %v1990
    %v1993 = vmul.f32 %v1990, %v1992
    %v1994 = vsub.f32 1.0, %v1993
    %v1995 = vmul.f32 %v1992, %v1994
    %v1996 = vadd.f32 %v1992, %v1995
    %vm1997 = vweird.f32 %v1990
    %vm1998 = vweird.f32 %v1992
    %vm1999 = vmor %vm1997, %vm1998
    %v2000 = vsel %vm1999, %v1992, %v1996
    %v2001 = vand.u32 2147483647, %v1990
    %vm2002 = vcmp.eq.f32.partialorder %v2001, 8.507059e+37
    %v2003 = vand.u32 %v1990, 2147483648
    %v2004 = vor.u32 1.1754944e-38, %v2003
    %v2005 = vsel %vm2002, %v2004, %v2000
    %v2006 = vmul.f32 1.0, %v2005
    %v2007 = vrcp.pop %v1991
    %v2008 = vmul.f32 %v1991, %v2007
    %v2009 = vsub.f32 1.0, %v2008
    %v2010 = vmul.f32 %v2007, %v2009
    %v2011 = vadd.f32 %v2007, %v2010
    %vm2012 = vweird.f32 %v1991
    %vm2013 = vweird.f32 %v2007
    %vm2014 = vmor %vm2012, %vm2013
    %v2015 = vsel %vm2014, %v2007, %v2011
    %v2016 = vand.u32 2147483647, %v1991
    %vm2017 = vcmp.eq.f32.partialorder %v2016, 8.507059e+37
    %v2018 = vand.u32 %v1991, 2147483648
    %v2019 = vor.u32 1.1754944e-38, %v2018
    %v2020 = vsel %vm2017, %v2019, %v2015
    %v2021 = vmul.f32 1.0, %v2020
    %v2022 = vxor.u32 %v1980, 2147483648
    %v2023 = vxor.u32 %v1981, 2147483648
    %v2024 = vmul.f32 %v2022, 1.442695
    %v2025 = vpow.pop %v2024
    %v2026 = vmul.f32 %v2023, 1.442695
    %v2027 = vpow.pop %v2026
    %v2028 = vadd.f32 %v2025, 1.0
    %v2029 = vadd.f32 %v2027, 1.0
    %v2030 = vrcp.pop %v2028
    %v2031 = vmul.f32 %v2028, %v2030
    %v2032 = vsub.f32 1.0, %v2031
    %v2033 = vmul.f32 %v2030, %v2032
    %v2034 = vadd.f32 %v2030, %v2033
    %vm2035 = vweird.f32 %v2028
    %vm2036 = vweird.f32 %v2030
    %vm2037 = vmor %vm2035, %vm2036
    %v2038 = vsel %vm2037, %v2030, %v2034
    %v2039 = vand.u32 2147483647, %v2028
    %vm2040 = vcmp.eq.f32.partialorder %v2039, 8.507059e+37
    %v2041 = vand.u32 %v2028, 2147483648
    %v2042 = vor.u32 1.1754944e-38, %v2041
    %v2043 = vsel %vm2040, %v2042, %v2038
    %v2044 = vmul.f32 1.0, %v2043
    %v2045 = vrcp.pop %v2029
    %v2046 = vmul.f32 %v2029, %v2045
    %v2047 = vsub.f32 1.0, %v2046
    %v2048 = vmul.f32 %v2045, %v2047
    %v2049 = vadd.f32 %v2045, %v2048
    %vm2050 = vweird.f32 %v2029
    %vm2051 = vweird.f32 %v2045
    %vm2052 = vmor %vm2050, %vm2051
    %v2053 = vsel %vm2052, %v2045, %v2049
    %v2054 = vand.u32 2147483647, %v2029
    %vm2055 = vcmp.eq.f32.partialorder %v2054, 8.507059e+37
    %v2056 = vand.u32 %v2029, 2147483648
    %v2057 = vor.u32 1.1754944e-38, %v2056
    %v2058 = vsel %vm2055, %v2057, %v2053
    %v2059 = vmul.f32 1.0, %v2058
    %2061 = vset.pattern.permute.xlu0 0
    %2062 = vperm.xlu0 %2061, %v2044
    %v2063 = vpop.permute.xlu0 %2062
    %2066 = vset.pattern.permute.xlu0 0
    %2067 = vperm.xlu0 %2066, %v2059
    %v2068 = vpop.permute.xlu0 %2067
    %v2070 = vmul.f32 %v2006, %v2063
    %v2071 = vmul.f32 %v2021, %v2068
    %vm2072 = vcmask 130048
    %v2074 = vsel %vm2072, %v2070, 0
    %v2077 = vsel %vm2072, %v2071, 0
    %2079 = vmatpush.msra.mxu0 0.0
    %2080 = vmatpush.msra.mxu0 0.0
    %2081 = vmatpush.msra.mxu0 0.0
    %2082 = vmatpush.msra.mxu0 0.0
    %2083 = vmatpush.msra.mxu0 0.0
    %2084 = vmatpush.msra.mxu0 0.0
    %2085 = vmatpush.msra.mxu0 0.0
    %2086 = vmatpush.msra.mxu0 0.0
    %2087 = vmatpush.msra.mxu0 0.0
    %2088 = vmatpush.msra.mxu0 0.0
    %2089 = vmatpush.msra.mxu0 0.0
    %2090 = vmatpush.msra.mxu0 0.0
    %2091 = vmatpush.msra.mxu0 0.0
    %2092 = vmatpush.msra.mxu0 0.0
    %v2093 = vand.u32 %v81, 4294901760
    %2094 = vmatpush.msra.mxu0 %v2093
    %v2095 = vand.u32 %v79, 4294901760
    %2096 = vmatpush.msra.mxu0 %v2095
    %v2097 = vand.u32 %v2074, 4294901760
    %v2098 = vsub.f32 %v2074, %v2097
    %v2099 = vand.u32 %v2098, 4294901760
    %v2100 = vsub.f32 %v2098, %v2099
    %v2101 = vand.u32 %v2100, 4294901760
    %2102 = vmatmul.f32.gmra.mxu0 %v2101
    %v2103 = vpop.f32.mrf.mxu0
    %v2104 = vadd.f32 0.0, %v2103
    %v2105 = vand.u32 %v2077, 4294901760
    %v2106 = vsub.f32 %v2077, %v2105
    %v2107 = vand.u32 %v2106, 4294901760
    %v2108 = vsub.f32 %v2106, %v2107
    %v2109 = vand.u32 %v2108, 4294901760
    %2110 = vmatmul.f32.gmra.mxu0 %v2109
    %v2111 = vpop.f32.mrf.mxu0
    %v2112 = vadd.f32 0.0, %v2111
    %2113 = vdwg.mxu0
    %2114 = vmatpush.msra.mxu0 0.0
    %2115 = vmatpush.msra.mxu0 0.0
    %2116 = vmatpush.msra.mxu0 0.0
    %2117 = vmatpush.msra.mxu0 0.0
    %2118 = vmatpush.msra.mxu0 0.0
    %2119 = vmatpush.msra.mxu0 0.0
    %2120 = vmatpush.msra.mxu0 0.0
    %2121 = vmatpush.msra.mxu0 0.0
    %2122 = vmatpush.msra.mxu0 0.0
    %2123 = vmatpush.msra.mxu0 0.0
    %2124 = vmatpush.msra.mxu0 0.0
    %2125 = vmatpush.msra.mxu0 0.0
    %2126 = vmatpush.msra.mxu0 0.0
    %2127 = vmatpush.msra.mxu0 0.0
    %v2128 = vand.u32 %v81, 4294901760
    %v2129 = vsub.f32 %v81, %v2128
    %v2130 = vand.u32 %v2129, 4294901760
    %v2131 = vsub.f32 %v2129, %v2130
    %v2132 = vand.u32 %v2131, 4294901760
    %2133 = vmatpush.msra.mxu0 %v2132
    %v2134 = vand.u32 %v79, 4294901760
    %v2135 = vsub.f32 %v79, %v2134
    %v2136 = vand.u32 %v2135, 4294901760
    %v2137 = vsub.f32 %v2135, %v2136
    %v2138 = vand.u32 %v2137, 4294901760
    %2139 = vmatpush.msra.mxu0 %v2138
    %v2140 = vand.u32 %v2074, 4294901760
    %2141 = vmatmul.f32.gmra.mxu0 %v2140
    %v2142 = vpop.f32.mrf.mxu0
    %v2143 = vadd.f32 %v2104, %v2142
    %v2144 = vand.u32 %v2077, 4294901760
    %2145 = vmatmul.f32.gmra.mxu0 %v2144
    %v2146 = vpop.f32.mrf.mxu0
    %v2147 = vadd.f32 %v2112, %v2146
    %2148 = vdwg.mxu0
    %2149 = vmatpush.msra.mxu0 0.0
    %2150 = vmatpush.msra.mxu0 0.0
    %2151 = vmatpush.msra.mxu0 0.0
    %2152 = vmatpush.msra.mxu0 0.0
    %2153 = vmatpush.msra.mxu0 0.0
    %2154 = vmatpush.msra.mxu0 0.0
    %2155 = vmatpush.msra.mxu0 0.0
    %2156 = vmatpush.msra.mxu0 0.0
    %2157 = vmatpush.msra.mxu0 0.0
    %2158 = vmatpush.msra.mxu0 0.0
    %2159 = vmatpush.msra.mxu0 0.0
    %2160 = vmatpush.msra.mxu0 0.0
    %2161 = vmatpush.msra.mxu0 0.0
    %2162 = vmatpush.msra.mxu0 0.0
    %v2163 = vand.u32 %v81, 4294901760
    %v2164 = vsub.f32 %v81, %v2163
    %2165 = vmatpush.msra.mxu0 %v2164
    %v2166 = vand.u32 %v79, 4294901760
    %v2167 = vsub.f32 %v79, %v2166
    %2168 = vmatpush.msra.mxu0 %v2167
    %v2169 = vand.u32 %v2074, 4294901760
    %v2170 = vsub.f32 %v2074, %v2169
    %2171 = vmatmul.f32.gmra.mxu0 %v2170
    %v2172 = vpop.f32.mrf.mxu0
    %v2173 = vadd.f32 %v2143, %v2172
    %v2174 = vand.u32 %v2077, 4294901760
    %v2175 = vsub.f32 %v2077, %v2174
    %2176 = vmatmul.f32.gmra.mxu0 %v2175
    %v2177 = vpop.f32.mrf.mxu0
    %v2178 = vadd.f32 %v2147, %v2177
    %2179 = vdwg.mxu0
    %2180 = vmatpush.msra.mxu0 0.0
    %2181 = vmatpush.msra.mxu0 0.0
    %2182 = vmatpush.msra.mxu0 0.0
    %2183 = vmatpush.msra.mxu0 0.0
    %2184 = vmatpush.msra.mxu0 0.0
    %2185 = vmatpush.msra.mxu0 0.0
    %2186 = vmatpush.msra.mxu0 0.0
    %2187 = vmatpush.msra.mxu0 0.0
    %2188 = vmatpush.msra.mxu0 0.0
    %2189 = vmatpush.msra.mxu0 0.0
    %2190 = vmatpush.msra.mxu0 0.0
    %2191 = vmatpush.msra.mxu0 0.0
    %2192 = vmatpush.msra.mxu0 0.0
    %2193 = vmatpush.msra.mxu0 0.0
    %v2194 = vand.u32 %v81, 4294901760
    %2195 = vmatpush.msra.mxu0 %v2194
    %v2196 = vand.u32 %v79, 4294901760
    %2197 = vmatpush.msra.mxu0 %v2196
    %v2198 = vand.u32 %v2074, 4294901760
    %v2199 = vsub.f32 %v2074, %v2198
    %v2200 = vand.u32 %v2199, 4294901760
    %2201 = vmatmul.f32.gmra.mxu0 %v2200
    %v2202 = vpop.f32.mrf.mxu0
    %v2203 = vadd.f32 %v2173, %v2202
    %v2204 = vand.u32 %v2077, 4294901760
    %v2205 = vsub.f32 %v2077, %v2204
    %v2206 = vand.u32 %v2205, 4294901760
    %2207 = vmatmul.f32.gmra.mxu0 %v2206
    %v2208 = vpop.f32.mrf.mxu0
    %v2209 = vadd.f32 %v2178, %v2208
    %2210 = vdwg.mxu0
    %2211 = vmatpush.msra.mxu0 0.0
    %2212 = vmatpush.msra.mxu0 0.0
    %2213 = vmatpush.msra.mxu0 0.0
    %2214 = vmatpush.msra.mxu0 0.0
    %2215 = vmatpush.msra.mxu0 0.0
    %2216 = vmatpush.msra.mxu0 0.0
    %2217 = vmatpush.msra.mxu0 0.0
    %2218 = vmatpush.msra.mxu0 0.0
    %2219 = vmatpush.msra.mxu0 0.0
    %2220 = vmatpush.msra.mxu0 0.0
    %2221 = vmatpush.msra.mxu0 0.0
    %2222 = vmatpush.msra.mxu0 0.0
    %2223 = vmatpush.msra.mxu0 0.0
    %2224 = vmatpush.msra.mxu0 0.0
    %v2225 = vand.u32 %v81, 4294901760
    %v2226 = vsub.f32 %v81, %v2225
    %v2227 = vand.u32 %v2226, 4294901760
    %2228 = vmatpush.msra.mxu0 %v2227
    %v2229 = vand.u32 %v79, 4294901760
    %v2230 = vsub.f32 %v79, %v2229
    %v2231 = vand.u32 %v2230, 4294901760
    %2232 = vmatpush.msra.mxu0 %v2231
    %v2233 = vand.u32 %v2074, 4294901760
    %2234 = vmatmul.f32.gmra.mxu0 %v2233
    %v2235 = vpop.f32.mrf.mxu0
    %v2236 = vadd.f32 %v2203, %v2235
    %v2237 = vand.u32 %v2077, 4294901760
    %2238 = vmatmul.f32.gmra.mxu0 %v2237
    %v2239 = vpop.f32.mrf.mxu0
    %v2240 = vadd.f32 %v2209, %v2239
    %2241 = vdwg.mxu0
    %2242 = vmatpush.msra.mxu0 0.0
    %2243 = vmatpush.msra.mxu0 0.0
    %2244 = vmatpush.msra.mxu0 0.0
    %2245 = vmatpush.msra.mxu0 0.0
    %2246 = vmatpush.msra.mxu0 0.0
    %2247 = vmatpush.msra.mxu0 0.0
    %2248 = vmatpush.msra.mxu0 0.0
    %2249 = vmatpush.msra.mxu0 0.0
    %2250 = vmatpush.msra.mxu0 0.0
    %2251 = vmatpush.msra.mxu0 0.0
    %2252 = vmatpush.msra.mxu0 0.0
    %2253 = vmatpush.msra.mxu0 0.0
    %2254 = vmatpush.msra.mxu0 0.0
    %2255 = vmatpush.msra.mxu0 0.0
    %v2256 = vand.u32 %v81, 4294901760
    %2257 = vmatpush.msra.mxu0 %v2256
    %v2258 = vand.u32 %v79, 4294901760
    %2259 = vmatpush.msra.mxu0 %v2258
    %v2260 = vand.u32 %v2074, 4294901760
    %2261 = vmatmul.f32.gmra.mxu0 %v2260
    %v2262 = vpop.f32.mrf.mxu0
    %v2263 = vadd.f32 %v2236, %v2262
    %v2264 = vand.u32 %v2077, 4294901760
    %2265 = vmatmul.f32.gmra.mxu0 %v2264
    %v2266 = vpop.f32.mrf.mxu0
    %v2267 = vadd.f32 %v2240, %v2266
    %2268 = vdwg.mxu0
    %2269 = vmatpush.msra.mxu0 0.0
    %2270 = vmatpush.msra.mxu0 0.0
    %2271 = vmatpush.msra.mxu0 0.0
    %2272 = vmatpush.msra.mxu0 0.0
    %2273 = vmatpush.msra.mxu0 0.0
    %2274 = vmatpush.msra.mxu0 0.0
    %2275 = vmatpush.msra.mxu0 0.0
    %2276 = vmatpush.msra.mxu0 0.0
    %2277 = vmatpush.msra.mxu0 0.0
    %2278 = vmatpush.msra.mxu0 0.0
    %2279 = vmatpush.msra.mxu0 0.0
    %2280 = vmatpush.msra.mxu0 0.0
    %2281 = vmatpush.msra.mxu0 0.0
    %2282 = vmatpush.msra.mxu0 0.0
    %v2283 = vand.u32 %v82, 4294901760
    %2284 = vmatpush.msra.mxu0 %v2283
    %v2285 = vand.u32 %v80, 4294901760
    %2286 = vmatpush.msra.mxu0 %v2285
    %v2287 = vand.u32 %v2074, 4294901760
    %v2288 = vsub.f32 %v2074, %v2287
    %v2289 = vand.u32 %v2288, 4294901760
    %v2290 = vsub.f32 %v2288, %v2289
    %v2291 = vand.u32 %v2290, 4294901760
    %2292 = vmatmul.f32.gmra.mxu0 %v2291
    %v2293 = vpop.f32.mrf.mxu0
    %v2294 = vadd.f32 0.0, %v2293
    %v2295 = vand.u32 %v2077, 4294901760
    %v2296 = vsub.f32 %v2077, %v2295
    %v2297 = vand.u32 %v2296, 4294901760
    %v2298 = vsub.f32 %v2296, %v2297
    %v2299 = vand.u32 %v2298, 4294901760
    %2300 = vmatmul.f32.gmra.mxu0 %v2299
    %v2301 = vpop.f32.mrf.mxu0
    %v2302 = vadd.f32 0.0, %v2301
    %2303 = vdwg.mxu0
    %2304 = vmatpush.msra.mxu0 0.0
    %2305 = vmatpush.msra.mxu0 0.0
    %2306 = vmatpush.msra.mxu0 0.0
    %2307 = vmatpush.msra.mxu0 0.0
    %2308 = vmatpush.msra.mxu0 0.0
    %2309 = vmatpush.msra.mxu0 0.0
    %2310 = vmatpush.msra.mxu0 0.0
    %2311 = vmatpush.msra.mxu0 0.0
    %2312 = vmatpush.msra.mxu0 0.0
    %2313 = vmatpush.msra.mxu0 0.0
    %2314 = vmatpush.msra.mxu0 0.0
    %2315 = vmatpush.msra.mxu0 0.0
    %2316 = vmatpush.msra.mxu0 0.0
    %2317 = vmatpush.msra.mxu0 0.0
    %v2318 = vand.u32 %v82, 4294901760
    %v2319 = vsub.f32 %v82, %v2318
    %v2320 = vand.u32 %v2319, 4294901760
    %v2321 = vsub.f32 %v2319, %v2320
    %v2322 = vand.u32 %v2321, 4294901760
    %2323 = vmatpush.msra.mxu0 %v2322
    %v2324 = vand.u32 %v80, 4294901760
    %v2325 = vsub.f32 %v80, %v2324
    %v2326 = vand.u32 %v2325, 4294901760
    %v2327 = vsub.f32 %v2325, %v2326
    %v2328 = vand.u32 %v2327, 4294901760
    %2329 = vmatpush.msra.mxu0 %v2328
    %v2330 = vand.u32 %v2074, 4294901760
    %2331 = vmatmul.f32.gmra.mxu0 %v2330
    %v2332 = vpop.f32.mrf.mxu0
    %v2333 = vadd.f32 %v2294, %v2332
    %v2334 = vand.u32 %v2077, 4294901760
    %2335 = vmatmul.f32.gmra.mxu0 %v2334
    %v2336 = vpop.f32.mrf.mxu0
    %v2337 = vadd.f32 %v2302, %v2336
    %2338 = vdwg.mxu0
    %2339 = vmatpush.msra.mxu0 0.0
    %2340 = vmatpush.msra.mxu0 0.0
    %2341 = vmatpush.msra.mxu0 0.0
    %2342 = vmatpush.msra.mxu0 0.0
    %2343 = vmatpush.msra.mxu0 0.0
    %2344 = vmatpush.msra.mxu0 0.0
    %2345 = vmatpush.msra.mxu0 0.0
    %2346 = vmatpush.msra.mxu0 0.0
    %2347 = vmatpush.msra.mxu0 0.0
    %2348 = vmatpush.msra.mxu0 0.0
    %2349 = vmatpush.msra.mxu0 0.0
    %2350 = vmatpush.msra.mxu0 0.0
    %2351 = vmatpush.msra.mxu0 0.0
    %2352 = vmatpush.msra.mxu0 0.0
    %v2353 = vand.u32 %v82, 4294901760
    %v2354 = vsub.f32 %v82, %v2353
    %2355 = vmatpush.msra.mxu0 %v2354
    %v2356 = vand.u32 %v80, 4294901760
    %v2357 = vsub.f32 %v80, %v2356
    %2358 = vmatpush.msra.mxu0 %v2357
    %v2359 = vand.u32 %v2074, 4294901760
    %v2360 = vsub.f32 %v2074, %v2359
    %2361 = vmatmul.f32.gmra.mxu0 %v2360
    %v2362 = vpop.f32.mrf.mxu0
    %v2363 = vadd.f32 %v2333, %v2362
    %v2364 = vand.u32 %v2077, 4294901760
    %v2365 = vsub.f32 %v2077, %v2364
    %2366 = vmatmul.f32.gmra.mxu0 %v2365
    %v2367 = vpop.f32.mrf.mxu0
    %v2368 = vadd.f32 %v2337, %v2367
    %2369 = vdwg.mxu0
    %2370 = vmatpush.msra.mxu0 0.0
    %2371 = vmatpush.msra.mxu0 0.0
    %2372 = vmatpush.msra.mxu0 0.0
    %2373 = vmatpush.msra.mxu0 0.0
    %2374 = vmatpush.msra.mxu0 0.0
    %2375 = vmatpush.msra.mxu0 0.0
    %2376 = vmatpush.msra.mxu0 0.0
    %2377 = vmatpush.msra.mxu0 0.0
    %2378 = vmatpush.msra.mxu0 0.0
    %2379 = vmatpush.msra.mxu0 0.0
    %2380 = vmatpush.msra.mxu0 0.0
    %2381 = vmatpush.msra.mxu0 0.0
    %2382 = vmatpush.msra.mxu0 0.0
    %2383 = vmatpush.msra.mxu0 0.0
    %v2384 = vand.u32 %v82, 4294901760
    %2385 = vmatpush.msra.mxu0 %v2384
    %v2386 = vand.u32 %v80, 4294901760
    %2387 = vmatpush.msra.mxu0 %v2386
    %v2388 = vand.u32 %v2074, 4294901760
    %v2389 = vsub.f32 %v2074, %v2388
    %v2390 = vand.u32 %v2389, 4294901760
    %2391 = vmatmul.f32.gmra.mxu0 %v2390
    %v2392 = vpop.f32.mrf.mxu0
    %v2393 = vadd.f32 %v2363, %v2392
    %v2394 = vand.u32 %v2077, 4294901760
    %v2395 = vsub.f32 %v2077, %v2394
    %v2396 = vand.u32 %v2395, 4294901760
    %2397 = vmatmul.f32.gmra.mxu0 %v2396
    %v2398 = vpop.f32.mrf.mxu0
    %v2399 = vadd.f32 %v2368, %v2398
    %2400 = vdwg.mxu0
    %2401 = vmatpush.msra.mxu0 0.0
    %2402 = vmatpush.msra.mxu0 0.0
    %2403 = vmatpush.msra.mxu0 0.0
    %2404 = vmatpush.msra.mxu0 0.0
    %2405 = vmatpush.msra.mxu0 0.0
    %2406 = vmatpush.msra.mxu0 0.0
    %2407 = vmatpush.msra.mxu0 0.0
    %2408 = vmatpush.msra.mxu0 0.0
    %2409 = vmatpush.msra.mxu0 0.0
    %2410 = vmatpush.msra.mxu0 0.0
    %2411 = vmatpush.msra.mxu0 0.0
    %2412 = vmatpush.msra.mxu0 0.0
    %2413 = vmatpush.msra.mxu0 0.0
    %2414 = vmatpush.msra.mxu0 0.0
    %v2415 = vand.u32 %v82, 4294901760
    %v2416 = vsub.f32 %v82, %v2415
    %v2417 = vand.u32 %v2416, 4294901760
    %2418 = vmatpush.msra.mxu0 %v2417
    %v2419 = vand.u32 %v80, 4294901760
    %v2420 = vsub.f32 %v80, %v2419
    %v2421 = vand.u32 %v2420, 4294901760
    %2422 = vmatpush.msra.mxu0 %v2421
    %v2423 = vand.u32 %v2074, 4294901760
    %2424 = vmatmul.f32.gmra.mxu0 %v2423
    %v2425 = vpop.f32.mrf.mxu0
    %v2426 = vadd.f32 %v2393, %v2425
    %v2427 = vand.u32 %v2077, 4294901760
    %2428 = vmatmul.f32.gmra.mxu0 %v2427
    %v2429 = vpop.f32.mrf.mxu0
    %v2430 = vadd.f32 %v2399, %v2429
    %2431 = vdwg.mxu0
    %2432 = vmatpush.msra.mxu0 0.0
    %2433 = vmatpush.msra.mxu0 0.0
    %2434 = vmatpush.msra.mxu0 0.0
    %2435 = vmatpush.msra.mxu0 0.0
    %2436 = vmatpush.msra.mxu0 0.0
    %2437 = vmatpush.msra.mxu0 0.0
    %2438 = vmatpush.msra.mxu0 0.0
    %2439 = vmatpush.msra.mxu0 0.0
    %2440 = vmatpush.msra.mxu0 0.0
    %2441 = vmatpush.msra.mxu0 0.0
    %2442 = vmatpush.msra.mxu0 0.0
    %2443 = vmatpush.msra.mxu0 0.0
    %2444 = vmatpush.msra.mxu0 0.0
    %2445 = vmatpush.msra.mxu0 0.0
    %v2446 = vand.u32 %v82, 4294901760
    %2447 = vmatpush.msra.mxu0 %v2446
    %v2448 = vand.u32 %v80, 4294901760
    %2449 = vmatpush.msra.mxu0 %v2448
    %v2450 = vand.u32 %v2074, 4294901760
    %2451 = vmatmul.f32.gmra.mxu0 %v2450
    %v2452 = vpop.f32.mrf.mxu0
    %v2453 = vadd.f32 %v2426, %v2452
    %v2454 = vand.u32 %v2077, 4294901760
    %2455 = vmatmul.f32.gmra.mxu0 %v2454
    %v2456 = vpop.f32.mrf.mxu0
    %v2457 = vadd.f32 %v2430, %v2456
    %2458 = vdwg.mxu0
    %2461 = vrot.lane.b32.xlu0 %v2006, 112
    %v2462 = vpop.permute.xlu0 %2461
    %2463 = vrot.lane.b32.xlu0 %v2021, 112
    %v2464 = vpop.permute.xlu0 %2463
    %v2465 = vsel %vm2072, %v2462, 0
    %v2467 = vsel %vm2072, %v2464, 0
    %2469 = vmatpush.msra.mxu0 0.0
    %2470 = vmatpush.msra.mxu0 0.0
    %2471 = vmatpush.msra.mxu0 0.0
    %2472 = vmatpush.msra.mxu0 0.0
    %2473 = vmatpush.msra.mxu0 0.0
    %2474 = vmatpush.msra.mxu0 0.0
    %2475 = vmatpush.msra.mxu0 0.0
    %2476 = vmatpush.msra.mxu0 0.0
    %2477 = vmatpush.msra.mxu0 0.0
    %2478 = vmatpush.msra.mxu0 0.0
    %2479 = vmatpush.msra.mxu0 0.0
    %2480 = vmatpush.msra.mxu0 0.0
    %2481 = vmatpush.msra.mxu0 0.0
    %2482 = vmatpush.msra.mxu0 0.0
    %v2483 = vand.u32 %v85, 4294901760
    %2484 = vmatpush.msra.mxu0 %v2483
    %v2485 = vand.u32 %v83, 4294901760
    %2486 = vmatpush.msra.mxu0 %v2485
    %v2487 = vand.u32 %v2465, 4294901760
    %v2488 = vsub.f32 %v2465, %v2487
    %v2489 = vand.u32 %v2488, 4294901760
    %v2490 = vsub.f32 %v2488, %v2489
    %v2491 = vand.u32 %v2490, 4294901760
    %2492 = vmatmul.f32.gmra.mxu0 %v2491
    %v2493 = vpop.f32.mrf.mxu0
    %v2494 = vadd.f32 0.0, %v2493
    %v2495 = vand.u32 %v2467, 4294901760
    %v2496 = vsub.f32 %v2467, %v2495
    %v2497 = vand.u32 %v2496, 4294901760
    %v2498 = vsub.f32 %v2496, %v2497
    %v2499 = vand.u32 %v2498, 4294901760
    %2500 = vmatmul.f32.gmra.mxu0 %v2499
    %v2501 = vpop.f32.mrf.mxu0
    %v2502 = vadd.f32 0.0, %v2501
    %2503 = vdwg.mxu0
    %2504 = vmatpush.msra.mxu0 0.0
    %2505 = vmatpush.msra.mxu0 0.0
    %2506 = vmatpush.msra.mxu0 0.0
    %2507 = vmatpush.msra.mxu0 0.0
    %2508 = vmatpush.msra.mxu0 0.0
    %2509 = vmatpush.msra.mxu0 0.0
    %2510 = vmatpush.msra.mxu0 0.0
    %2511 = vmatpush.msra.mxu0 0.0
    %2512 = vmatpush.msra.mxu0 0.0
    %2513 = vmatpush.msra.mxu0 0.0
    %2514 = vmatpush.msra.mxu0 0.0
    %2515 = vmatpush.msra.mxu0 0.0
    %2516 = vmatpush.msra.mxu0 0.0
    %2517 = vmatpush.msra.mxu0 0.0
    %v2518 = vand.u32 %v85, 4294901760
    %v2519 = vsub.f32 %v85, %v2518
    %v2520 = vand.u32 %v2519, 4294901760
    %v2521 = vsub.f32 %v2519, %v2520
    %v2522 = vand.u32 %v2521, 4294901760
    %2523 = vmatpush.msra.mxu0 %v2522
    %v2524 = vand.u32 %v83, 4294901760
    %v2525 = vsub.f32 %v83, %v2524
    %v2526 = vand.u32 %v2525, 4294901760
    %v2527 = vsub.f32 %v2525, %v2526
    %v2528 = vand.u32 %v2527, 4294901760
    %2529 = vmatpush.msra.mxu0 %v2528
    %v2530 = vand.u32 %v2465, 4294901760
    %2531 = vmatmul.f32.gmra.mxu0 %v2530
    %v2532 = vpop.f32.mrf.mxu0
    %v2533 = vadd.f32 %v2494, %v2532
    %v2534 = vand.u32 %v2467, 4294901760
    %2535 = vmatmul.f32.gmra.mxu0 %v2534
    %v2536 = vpop.f32.mrf.mxu0
    %v2537 = vadd.f32 %v2502, %v2536
    %2538 = vdwg.mxu0
    %2539 = vmatpush.msra.mxu0 0.0
    %2540 = vmatpush.msra.mxu0 0.0
    %2541 = vmatpush.msra.mxu0 0.0
    %2542 = vmatpush.msra.mxu0 0.0
    %2543 = vmatpush.msra.mxu0 0.0
    %2544 = vmatpush.msra.mxu0 0.0
    %2545 = vmatpush.msra.mxu0 0.0
    %2546 = vmatpush.msra.mxu0 0.0
    %2547 = vmatpush.msra.mxu0 0.0
    %2548 = vmatpush.msra.mxu0 0.0
    %2549 = vmatpush.msra.mxu0 0.0
    %2550 = vmatpush.msra.mxu0 0.0
    %2551 = vmatpush.msra.mxu0 0.0
    %2552 = vmatpush.msra.mxu0 0.0
    %v2553 = vand.u32 %v85, 4294901760
    %v2554 = vsub.f32 %v85, %v2553
    %2555 = vmatpush.msra.mxu0 %v2554
    %v2556 = vand.u32 %v83, 4294901760
    %v2557 = vsub.f32 %v83, %v2556
    %2558 = vmatpush.msra.mxu0 %v2557
    %v2559 = vand.u32 %v2465, 4294901760
    %v2560 = vsub.f32 %v2465, %v2559
    %2561 = vmatmul.f32.gmra.mxu0 %v2560
    %v2562 = vpop.f32.mrf.mxu0
    %v2563 = vadd.f32 %v2533, %v2562
    %v2564 = vand.u32 %v2467, 4294901760
    %v2565 = vsub.f32 %v2467, %v2564
    %2566 = vmatmul.f32.gmra.mxu0 %v2565
    %v2567 = vpop.f32.mrf.mxu0
    %v2568 = vadd.f32 %v2537, %v2567
    %2569 = vdwg.mxu0
    %2570 = vmatpush.msra.mxu0 0.0
    %2571 = vmatpush.msra.mxu0 0.0
    %2572 = vmatpush.msra.mxu0 0.0
    %2573 = vmatpush.msra.mxu0 0.0
    %2574 = vmatpush.msra.mxu0 0.0
    %2575 = vmatpush.msra.mxu0 0.0
    %2576 = vmatpush.msra.mxu0 0.0
    %2577 = vmatpush.msra.mxu0 0.0
    %2578 = vmatpush.msra.mxu0 0.0
    %2579 = vmatpush.msra.mxu0 0.0
    %2580 = vmatpush.msra.mxu0 0.0
    %2581 = vmatpush.msra.mxu0 0.0
    %2582 = vmatpush.msra.mxu0 0.0
    %2583 = vmatpush.msra.mxu0 0.0
    %v2584 = vand.u32 %v85, 4294901760
    %2585 = vmatpush.msra.mxu0 %v2584
    %v2586 = vand.u32 %v83, 4294901760
    %2587 = vmatpush.msra.mxu0 %v2586
    %v2588 = vand.u32 %v2465, 4294901760
    %v2589 = vsub.f32 %v2465, %v2588
    %v2590 = vand.u32 %v2589, 4294901760
    %2591 = vmatmul.f32.gmra.mxu0 %v2590
    %v2592 = vpop.f32.mrf.mxu0
    %v2593 = vadd.f32 %v2563, %v2592
    %v2594 = vand.u32 %v2467, 4294901760
    %v2595 = vsub.f32 %v2467, %v2594
    %v2596 = vand.u32 %v2595, 4294901760
    %2597 = vmatmul.f32.gmra.mxu0 %v2596
    %v2598 = vpop.f32.mrf.mxu0
    %v2599 = vadd.f32 %v2568, %v2598
    %2600 = vdwg.mxu0
    %2601 = vmatpush.msra.mxu0 0.0
    %2602 = vmatpush.msra.mxu0 0.0
    %2603 = vmatpush.msra.mxu0 0.0
    %2604 = vmatpush.msra.mxu0 0.0
    %2605 = vmatpush.msra.mxu0 0.0
    %2606 = vmatpush.msra.mxu0 0.0
    %2607 = vmatpush.msra.mxu0 0.0
    %2608 = vmatpush.msra.mxu0 0.0
    %2609 = vmatpush.msra.mxu0 0.0
    %2610 = vmatpush.msra.mxu0 0.0
    %2611 = vmatpush.msra.mxu0 0.0
    %2612 = vmatpush.msra.mxu0 0.0
    %2613 = vmatpush.msra.mxu0 0.0
    %2614 = vmatpush.msra.mxu0 0.0
    %v2615 = vand.u32 %v85, 4294901760
    %v2616 = vsub.f32 %v85, %v2615
    %v2617 = vand.u32 %v2616, 4294901760
    %2618 = vmatpush.msra.mxu0 %v2617
    %v2619 = vand.u32 %v83, 4294901760
    %v2620 = vsub.f32 %v83, %v2619
    %v2621 = vand.u32 %v2620, 4294901760
    %2622 = vmatpush.msra.mxu0 %v2621
    %v2623 = vand.u32 %v2465, 4294901760
    %2624 = vmatmul.f32.gmra.mxu0 %v2623
    %v2625 = vpop.f32.mrf.mxu0
    %v2626 = vadd.f32 %v2593, %v2625
    %v2627 = vand.u32 %v2467, 4294901760
    %2628 = vmatmul.f32.gmra.mxu0 %v2627
    %v2629 = vpop.f32.mrf.mxu0
    %v2630 = vadd.f32 %v2599, %v2629
    %2631 = vdwg.mxu0
    %2632 = vmatpush.msra.mxu0 0.0
    %2633 = vmatpush.msra.mxu0 0.0
    %2634 = vmatpush.msra.mxu0 0.0
    %2635 = vmatpush.msra.mxu0 0.0
    %2636 = vmatpush.msra.mxu0 0.0
    %2637 = vmatpush.msra.mxu0 0.0
    %2638 = vmatpush.msra.mxu0 0.0
    %2639 = vmatpush.msra.mxu0 0.0
    %2640 = vmatpush.msra.mxu0 0.0
    %2641 = vmatpush.msra.mxu0 0.0
    %2642 = vmatpush.msra.mxu0 0.0
    %2643 = vmatpush.msra.mxu0 0.0
    %2644 = vmatpush.msra.mxu0 0.0
    %2645 = vmatpush.msra.mxu0 0.0
    %v2646 = vand.u32 %v85, 4294901760
    %2647 = vmatpush.msra.mxu0 %v2646
    %v2648 = vand.u32 %v83, 4294901760
    %2649 = vmatpush.msra.mxu0 %v2648
    %v2650 = vand.u32 %v2465, 4294901760
    %2651 = vmatmul.f32.gmra.mxu0 %v2650
    %v2652 = vpop.f32.mrf.mxu0
    %v2653 = vadd.f32 %v2626, %v2652
    %v2654 = vand.u32 %v2467, 4294901760
    %2655 = vmatmul.f32.gmra.mxu0 %v2654
    %v2656 = vpop.f32.mrf.mxu0
    %v2657 = vadd.f32 %v2630, %v2656
    %2658 = vdwg.mxu0
    %2659 = vmatpush.msra.mxu0 0.0
    %2660 = vmatpush.msra.mxu0 0.0
    %2661 = vmatpush.msra.mxu0 0.0
    %2662 = vmatpush.msra.mxu0 0.0
    %2663 = vmatpush.msra.mxu0 0.0
    %2664 = vmatpush.msra.mxu0 0.0
    %2665 = vmatpush.msra.mxu0 0.0
    %2666 = vmatpush.msra.mxu0 0.0
    %2667 = vmatpush.msra.mxu0 0.0
    %2668 = vmatpush.msra.mxu0 0.0
    %2669 = vmatpush.msra.mxu0 0.0
    %2670 = vmatpush.msra.mxu0 0.0
    %2671 = vmatpush.msra.mxu0 0.0
    %2672 = vmatpush.msra.mxu0 0.0
    %v2673 = vand.u32 %v86, 4294901760
    %2674 = vmatpush.msra.mxu0 %v2673
    %v2675 = vand.u32 %v84, 4294901760
    %2676 = vmatpush.msra.mxu0 %v2675
    %v2677 = vand.u32 %v2465, 4294901760
    %v2678 = vsub.f32 %v2465, %v2677
    %v2679 = vand.u32 %v2678, 4294901760
    %v2680 = vsub.f32 %v2678, %v2679
    %v2681 = vand.u32 %v2680, 4294901760
    %2682 = vmatmul.f32.gmra.mxu0 %v2681
    %v2683 = vpop.f32.mrf.mxu0
    %v2684 = vadd.f32 0.0, %v2683
    %v2685 = vand.u32 %v2467, 4294901760
    %v2686 = vsub.f32 %v2467, %v2685
    %v2687 = vand.u32 %v2686, 4294901760
    %v2688 = vsub.f32 %v2686, %v2687
    %v2689 = vand.u32 %v2688, 4294901760
    %2690 = vmatmul.f32.gmra.mxu0 %v2689
    %v2691 = vpop.f32.mrf.mxu0
    %v2692 = vadd.f32 0.0, %v2691
    %2693 = vdwg.mxu0
    %2694 = vmatpush.msra.mxu0 0.0
    %2695 = vmatpush.msra.mxu0 0.0
    %2696 = vmatpush.msra.mxu0 0.0
    %2697 = vmatpush.msra.mxu0 0.0
    %2698 = vmatpush.msra.mxu0 0.0
    %2699 = vmatpush.msra.mxu0 0.0
    %2700 = vmatpush.msra.mxu0 0.0
    %2701 = vmatpush.msra.mxu0 0.0
    %2702 = vmatpush.msra.mxu0 0.0
    %2703 = vmatpush.msra.mxu0 0.0
    %2704 = vmatpush.msra.mxu0 0.0
    %2705 = vmatpush.msra.mxu0 0.0
    %2706 = vmatpush.msra.mxu0 0.0
    %2707 = vmatpush.msra.mxu0 0.0
    %v2708 = vand.u32 %v86, 4294901760
    %v2709 = vsub.f32 %v86, %v2708
    %v2710 = vand.u32 %v2709, 4294901760
    %v2711 = vsub.f32 %v2709, %v2710
    %v2712 = vand.u32 %v2711, 4294901760
    %2713 = vmatpush.msra.mxu0 %v2712
    %v2714 = vand.u32 %v84, 4294901760
    %v2715 = vsub.f32 %v84, %v2714
    %v2716 = vand.u32 %v2715, 4294901760
    %v2717 = vsub.f32 %v2715, %v2716
    %v2718 = vand.u32 %v2717, 4294901760
    %2719 = vmatpush.msra.mxu0 %v2718
    %v2720 = vand.u32 %v2465, 4294901760
    %2721 = vmatmul.f32.gmra.mxu0 %v2720
    %v2722 = vpop.f32.mrf.mxu0
    %v2723 = vadd.f32 %v2684, %v2722
    %v2724 = vand.u32 %v2467, 4294901760
    %2725 = vmatmul.f32.gmra.mxu0 %v2724
    %v2726 = vpop.f32.mrf.mxu0
    %v2727 = vadd.f32 %v2692, %v2726
    %2728 = vdwg.mxu0
    %2729 = vmatpush.msra.mxu0 0.0
    %2730 = vmatpush.msra.mxu0 0.0
    %2731 = vmatpush.msra.mxu0 0.0
    %2732 = vmatpush.msra.mxu0 0.0
    %2733 = vmatpush.msra.mxu0 0.0
    %2734 = vmatpush.msra.mxu0 0.0
    %2735 = vmatpush.msra.mxu0 0.0
    %2736 = vmatpush.msra.mxu0 0.0
    %2737 = vmatpush.msra.mxu0 0.0
    %2738 = vmatpush.msra.mxu0 0.0
    %2739 = vmatpush.msra.mxu0 0.0
    %2740 = vmatpush.msra.mxu0 0.0
    %2741 = vmatpush.msra.mxu0 0.0
    %2742 = vmatpush.msra.mxu0 0.0
    %v2743 = vand.u32 %v86, 4294901760
    %v2744 = vsub.f32 %v86, %v2743
    %2745 = vmatpush.msra.mxu0 %v2744
    %v2746 = vand.u32 %v84, 4294901760
    %v2747 = vsub.f32 %v84, %v2746
    %2748 = vmatpush.msra.mxu0 %v2747
    %v2749 = vand.u32 %v2465, 4294901760
    %v2750 = vsub.f32 %v2465, %v2749
    %2751 = vmatmul.f32.gmra.mxu0 %v2750
    %v2752 = vpop.f32.mrf.mxu0
    %v2753 = vadd.f32 %v2723, %v2752
    %v2754 = vand.u32 %v2467, 4294901760
    %v2755 = vsub.f32 %v2467, %v2754
    %2756 = vmatmul.f32.gmra.mxu0 %v2755
    %v2757 = vpop.f32.mrf.mxu0
    %v2758 = vadd.f32 %v2727, %v2757
    %2759 = vdwg.mxu0
    %2760 = vmatpush.msra.mxu0 0.0
    %2761 = vmatpush.msra.mxu0 0.0
    %2762 = vmatpush.msra.mxu0 0.0
    %2763 = vmatpush.msra.mxu0 0.0
    %2764 = vmatpush.msra.mxu0 0.0
    %2765 = vmatpush.msra.mxu0 0.0
    %2766 = vmatpush.msra.mxu0 0.0
    %2767 = vmatpush.msra.mxu0 0.0
    %2768 = vmatpush.msra.mxu0 0.0
    %2769 = vmatpush.msra.mxu0 0.0
    %2770 = vmatpush.msra.mxu0 0.0
    %2771 = vmatpush.msra.mxu0 0.0
    %2772 = vmatpush.msra.mxu0 0.0
    %2773 = vmatpush.msra.mxu0 0.0
    %v2774 = vand.u32 %v86, 4294901760
    %2775 = vmatpush.msra.mxu0 %v2774
    %v2776 = vand.u32 %v84, 4294901760
    %2777 = vmatpush.msra.mxu0 %v2776
    %v2778 = vand.u32 %v2465, 4294901760
    %v2779 = vsub.f32 %v2465, %v2778
    %v2780 = vand.u32 %v2779, 4294901760
    %2781 = vmatmul.f32.gmra.mxu0 %v2780
    %v2782 = vpop.f32.mrf.mxu0
    %v2783 = vadd.f32 %v2753, %v2782
    %v2784 = vand.u32 %v2467, 4294901760
    %v2785 = vsub.f32 %v2467, %v2784
    %v2786 = vand.u32 %v2785, 4294901760
    %2787 = vmatmul.f32.gmra.mxu0 %v2786
    %v2788 = vpop.f32.mrf.mxu0
    %v2789 = vadd.f32 %v2758, %v2788
    %2790 = vdwg.mxu0
    %2791 = vmatpush.msra.mxu0 0.0
    %2792 = vmatpush.msra.mxu0 0.0
    %2793 = vmatpush.msra.mxu0 0.0
    %2794 = vmatpush.msra.mxu0 0.0
    %2795 = vmatpush.msra.mxu0 0.0
    %2796 = vmatpush.msra.mxu0 0.0
    %2797 = vmatpush.msra.mxu0 0.0
    %2798 = vmatpush.msra.mxu0 0.0
    %2799 = vmatpush.msra.mxu0 0.0
    %2800 = vmatpush.msra.mxu0 0.0
    %2801 = vmatpush.msra.mxu0 0.0
    %2802 = vmatpush.msra.mxu0 0.0
    %2803 = vmatpush.msra.mxu0 0.0
    %2804 = vmatpush.msra.mxu0 0.0
    %v2805 = vand.u32 %v86, 4294901760
    %v2806 = vsub.f32 %v86, %v2805
    %v2807 = vand.u32 %v2806, 4294901760
    %2808 = vmatpush.msra.mxu0 %v2807
    %v2809 = vand.u32 %v84, 4294901760
    %v2810 = vsub.f32 %v84, %v2809
    %v2811 = vand.u32 %v2810, 4294901760
    %2812 = vmatpush.msra.mxu0 %v2811
    %v2813 = vand.u32 %v2465, 4294901760
    %2814 = vmatmul.f32.gmra.mxu0 %v2813
    %v2815 = vpop.f32.mrf.mxu0
    %v2816 = vadd.f32 %v2783, %v2815
    %v2817 = vand.u32 %v2467, 4294901760
    %2818 = vmatmul.f32.gmra.mxu0 %v2817
    %v2819 = vpop.f32.mrf.mxu0
    %v2820 = vadd.f32 %v2789, %v2819
    %2821 = vdwg.mxu0
    %2822 = vmatpush.msra.mxu0 0.0
    %2823 = vmatpush.msra.mxu0 0.0
    %2824 = vmatpush.msra.mxu0 0.0
    %2825 = vmatpush.msra.mxu0 0.0
    %2826 = vmatpush.msra.mxu0 0.0
    %2827 = vmatpush.msra.mxu0 0.0
    %2828 = vmatpush.msra.mxu0 0.0
    %2829 = vmatpush.msra.mxu0 0.0
    %2830 = vmatpush.msra.mxu0 0.0
    %2831 = vmatpush.msra.mxu0 0.0
    %2832 = vmatpush.msra.mxu0 0.0
    %2833 = vmatpush.msra.mxu0 0.0
    %2834 = vmatpush.msra.mxu0 0.0
    %2835 = vmatpush.msra.mxu0 0.0
    %v2836 = vand.u32 %v86, 4294901760
    %2837 = vmatpush.msra.mxu0 %v2836
    %v2838 = vand.u32 %v84, 4294901760
    %2839 = vmatpush.msra.mxu0 %v2838
    %v2840 = vand.u32 %v2465, 4294901760
    %2841 = vmatmul.f32.gmra.mxu0 %v2840
    %v2842 = vpop.f32.mrf.mxu0
    %v2843 = vadd.f32 %v2816, %v2842
    %v2844 = vand.u32 %v2467, 4294901760
    %2845 = vmatmul.f32.gmra.mxu0 %v2844
    %v2846 = vpop.f32.mrf.mxu0
    %v2847 = vadd.f32 %v2820, %v2846
    %2848 = vdwg.mxu0
    %v2849 = vmul.f32 %v2263, %v2653
    %v2850 = vmul.f32 %v2453, %v2843
    %v2851 = vmul.f32 %v2267, %v2657
    %v2852 = vmul.f32 %v2457, %v2847
    %v2853 = vadd.f32 %v2849, 1.0
    %v2854 = vadd.f32 %v2850, 1.0
    %v2855 = vadd.f32 %v2851, 1.0
    %v2856 = vadd.f32 %v2852, 1.0
    %v2857 = vmul.f32 %v43, %v2853
    %v2858 = vmul.f32 %v44, %v2854
    %v2859 = vmul.f32 %v45, %v2855
    %v2860 = vmul.f32 %v46, %v2856
    %2861 = vst [vmem:[#allocation5] sm:$0xff] %v2857
    %2862 = vst [vmem:[#allocation5 + $0x8] sm:$0xff] %v2858
    %2863 = vst [vmem:[#allocation5 + $0x10] sm:$0xff] %v2859
    %2864 = vst [vmem:[#allocation5 + $0x18] sm:$0xff] %v2860
    // Predicated region
    $region34: #{tpu_custom_call.1} parent=1 // pred_check
      _
    $region35: #{tpu_custom_call.1} parent=1 // pred_check_branch
      %2866 = sbr.rel (0) target = $region37
    $region36: #{tpu_custom_call.1} parent=1 // pred_region
      %2868 = vsyncadd [#allocation4], 0
      %s2869 = sshll.u32 [#allocation5], 4
      %s2870 = int_to_ptr.vmem [resolvable:$true] %s2869
      %s2871 = sshll.u32 %s7, 4
      %s2872 = int_to_ptr.hbm [resolvable:$true] %s2871
      %2877 = dma.vmem_to_hbm [thread:$0]  %s2870, 512, %s2872, [#allocation4], 256, 256, 16
    $region37: #{tpu_custom_call.1} parent=1 // pred_fallthru
      _
    // Predicated region
    $region38: #{tpu_custom_call.1} parent=1 // pred_check
      _
    $region39: #{tpu_custom_call.1} parent=1 // pred_check_branch
      %2879 = sbr.rel (0) target = $region41
    $region40: #{tpu_custom_call.1} parent=1 // pred_region
      %2881 = dma.done [#allocation4], 512
    $region41: #{tpu_custom_call.1} parent=1 // pred_fallthru
      _
    %2882 = vsyncpa [#allocation3], 1
    %2883 = vsyncpa [#allocation4], 1

</llo_original>
